<compile_context>
chip_gen: v5e
topology: v5e:2x2
jax: 0.10.0
libtpu: 0.0.40
codegen_flags: <defaults>
</compile_context>

<pallas_src>
import functools

import jax
import jax.numpy as jnp
from jax import lax
from jax.experimental import pallas as pl
from jax.experimental.pallas import tpu as pltpu


def _viterbi_fwd_kernel(feats_ref, len_ref, trans_ref, bp_ref, last_ref, part_scr,
                        *, start_idx, t_real, ts_chunk):
    tc = pl.program_id(1)                    # time-chunk index (innermost, sequential)
    trans = trans_ref[...]                   # (Tp, Tp) resident
    lengths = len_ref[...]                   # (Bp_blk, 1) int32 resident
    start_row = trans[start_idx:start_idx + 1, :]   # (1, Tp)

    @pl.when(tc == 0)
    def _():
        part_scr[...] = jnp.zeros_like(part_scr)
        last_ref[...] = jnp.zeros_like(last_ref)

    def step(ts, carry):
        t = tc * ts_chunk + ts               # global timestep
        feat = feats_ref[ts]                 # (Bp_blk, Tp)
        part = part_scr[...]                 # (Bp_blk, Tp)

        # Running max / first-argmax over previous tags (pure VPU compare/select chain).
        best = part[:, 0:1] + trans[0:1, :] + feat
        bp = jnp.zeros(best.shape, jnp.int32)
        for i in range(1, t_real):
            cand = part[:, i:i + 1] + trans[i:i + 1, :] + feat
            take = cand > best               # strict > keeps the FIRST maximal index
            best = jnp.where(take, cand, best)
            bp = jnp.where(take, jnp.int32(i), bp)

        is_first = t == 0
        init_part = feat + start_row         # scores[0][:, START, :]
        new_part = jnp.where(is_first, init_part, best)

        valid = lengths > t                  # (Bp_blk, 1) in-kernel mask (prefix/length mask)
        cur_bp = jnp.where(valid & jnp.logical_not(is_first), bp, 0)

        part_scr[...] = new_part                                     # unmasked (matches PyTorch)
        last_ref[...] = jnp.where(valid, new_part, last_ref[...])    # partition at t = length-1
        bp_ref[ts] = cur_bp
        return carry

    lax.fori_loop(0, ts_chunk, step, 0, unroll=True)


def viterbi_forward_pallas(feats_pad, len_pad, trans_pad, start_idx, *, t_real, ts_chunk, bb):
    """Run the Viterbi forward recursion on TPU via Pallas (padded, time-chunked layout)."""
    S_pad, Bp, Tp = feats_pad.shape
    n_bb = Bp // bb
    n_tc = S_pad // ts_chunk

    kernel = functools.partial(_viterbi_fwd_kernel, start_idx=start_idx,
                               t_real=t_real, ts_chunk=ts_chunk)
    bp, last = pl.pallas_call(
        kernel,
        out_shape=(jax.ShapeDtypeStruct((S_pad, Bp, Tp), jnp.int32),
                   jax.ShapeDtypeStruct((Bp, Tp), jnp.float32)),
        grid_spec=pltpu.PrefetchScalarGridSpec(
            num_scalar_prefetch=0,
            grid=(n_bb, n_tc),
            in_specs=[
                pl.BlockSpec((ts_chunk, bb, Tp), lambda b, t: (t, b, 0)),   # feats chunk
                pl.BlockSpec((bb, 1), lambda b, t: (b, 0)),                 # lengths (resident)
                pl.BlockSpec((Tp, Tp), lambda b, t: (0, 0)),                # transitions (resident)
            ],
            out_specs=[
                pl.BlockSpec((ts_chunk, bb, Tp), lambda b, t: (t, b, 0)),   # backpointers chunk
                pl.BlockSpec((bb, Tp), lambda b, t: (b, 0)),                # last_partition (accum)
            ],
            scratch_shapes=[pltpu.VMEM((bb, Tp), jnp.float32)],             # carried partition
        ),
        compiler_params=pltpu.CompilerParams(
            dimension_semantics=("parallel", "arbitrary")),   # batch parallel, time sequential
    )(feats_pad, len_pad, trans_pad)
    return bp, last


def _finish_decode(last_partition, back_points_sbt, lengths, transitions, stop_idx):
    """Final STOP-transition argmax + scatter + reverse-scan pointer backtracking (JAX glue)."""
    S, B, T = back_points_sbt.shape
    last_pos = lengths - 1                                               # (B,)

    last_values = last_partition[:, :, None] + transitions[None, :, :]   # (B, T, T)
    last_bp = jnp.argmax(last_values, axis=1).astype(jnp.int32)          # (B, T)
    pointer = last_bp[:, stop_idx]                                       # (B,)

    bp_bst = jnp.transpose(back_points_sbt, (1, 0, 2))                   # (B, S, T)
    bp_bst = bp_bst.at[jnp.arange(B), last_pos, :].set(pointer[:, None])
    bp_sbt = jnp.transpose(bp_bst, (1, 0, 2))                            # (S, B, T)

    def scan_body(ptr, bp_t):
        new_ptr = jnp.take_along_axis(bp_t, ptr[:, None], axis=1)[:, 0]
        return new_ptr, new_ptr

    _, ys = lax.scan(scan_body, pointer, bp_sbt[:S - 1], reverse=True)   # (S-1, B)
    decode_sb = jnp.concatenate([ys, pointer[None, :]], axis=0)          # (S, B)
    return decode_sb.T                                                   # (B, S)


def crf_forward(feats_bst, mask_bs, transitions, tag2id):
    """Equivalent of CRF.forward -> (path_score=None, decode_idx).  mask is a prefix/length mask."""
    B, S, T = feats_bst.shape
    start_idx = tag2id["<START>"]
    stop_idx = tag2id["<STOP>"]

    # Padding for lane density (T -> multiple of 128 lanes, B -> multiple of 8 sublanes)
    Tp = ((T + 127) // 128) * 128
    Bp = ((B + 7) // 8) * 8
    ts_chunk = min(32, S)
    S_pad = ((S + ts_chunk - 1) // ts_chunk) * ts_chunk

    feats_sbt = jnp.transpose(feats_bst, (1, 0, 2)).astype(jnp.float32)      # (S, B, T)
    feats_pad = jnp.zeros((S_pad, Bp, Tp), jnp.float32).at[:S, :B, :T].set(feats_sbt)
    trans_pad = jnp.zeros((Tp, Tp), jnp.float32).at[:T, :T].set(transitions.astype(jnp.float32))
    lengths = jnp.sum(mask_bs.astype(jnp.int32), axis=1)                     # (B,)
    len_pad = jnp.zeros((Bp, 1), jnp.int32).at[:B, 0].set(lengths)

    bp_pad, last_pad = viterbi_forward_pallas(
        feats_pad, len_pad, trans_pad, start_idx, t_real=T, ts_chunk=ts_chunk, bb=Bp)

    bp_raw = bp_pad[:S, :B, :T]                # (S, B, T) backpointers (bp_raw[0] = 0)
    last_partition = last_pad[:B, :T]          # (B, T)    partition at t = length-1

    # PyTorch: back_points = [cur_bp(step 1), ..., cur_bp(step S-1), zeros]
    back_points = jnp.concatenate([bp_raw[1:], jnp.zeros((1, B, T), jnp.int32)], axis=0)

    decode_idx = _finish_decode(last_partition, back_points, lengths, transitions, stop_idx)
    return None, decode_idx


def crf_forward_ref(feats_bst, mask_bs, transitions, tag2id):
    """Pure-JAX reference of _viterbi_decode for verification."""
    B, S, T = feats_bst.shape
    start_idx = tag2id["<START>"]
    stop_idx = tag2id["<STOP>"]

    feats_sbt = jnp.transpose(feats_bst, (1, 0, 2)).astype(jnp.float32)
    scores = feats_sbt[:, :, None, :] + transitions[None, None, :, :]   # (S, B, T, T)

    partition = scores[0][:, start_idx, :]                              # (B, T)
    ph = [partition]
    bps = []
    for t in range(1, S):
        cur = scores[t] + partition[:, :, None]
        partition = jnp.max(cur, axis=1)
        cur_bp = jnp.argmax(cur, axis=1).astype(jnp.int32)
        cur_bp = jnp.where(mask_bs[:, t][:, None] > 0, cur_bp, 0)
        ph.append(partition)
        bps.append(cur_bp)
    bps.append(jnp.zeros((B, T), jnp.int32))
    ph = jnp.stack(ph, axis=0)                                          # (S, B, T)
    back_points = jnp.stack(bps, axis=0)                                # (S, B, T)

    lengths = jnp.sum(mask_bs.astype(jnp.int32), axis=1)
    last_pos = lengths - 1
    ph_bst = jnp.transpose(ph, (1, 0, 2))
    last_partition = jnp.take_along_axis(ph_bst, last_pos[:, None, None], axis=1)[:, 0, :]
    last_values = last_partition[:, :, None] + transitions[None, :, :]
    last_bp = jnp.argmax(last_values, axis=1).astype(jnp.int32)
    pointer = last_bp[:, stop_idx]

    bp_bst = jnp.transpose(back_points, (1, 0, 2))
    bp_bst = bp_bst.at[jnp.arange(B), last_pos, :].set(pointer[:, None])
    bp_sbt = jnp.transpose(bp_bst, (1, 0, 2))

    decode = [None] * S
    decode[S - 1] = pointer
    for idx in range(S - 2, -1, -1):
        pointer = jnp.take_along_axis(bp_sbt[idx], pointer[:, None], axis=1)[:, 0]
        decode[idx] = pointer
    return None, jnp.stack(decode, axis=0).T


if __name__ == "__main__":
    # Small deterministic example: 4 real tags + <START> + <STOP>  => tag_size = 6
    batch, seq_len, tag_size = 2, 8, 6
    tag2id = {"<START>": tag_size - 2, "<STOP>": tag_size - 1}

    key = jax.random.PRNGKey(0)
    k_feats, k_trans = jax.random.split(key)
    feats = jax.random.normal(k_feats, (batch, seq_len, tag_size), dtype=jnp.float32)
    # Module inits transitions to zeros; use small deterministic random values instead
    # so the argmax is non-degenerate (synthetic weights, no checkpoint load).
    transitions = 0.1 * jax.random.normal(k_trans, (tag_size, tag_size), dtype=jnp.float32)

    lengths = jnp.array([seq_len, 5], dtype=jnp.int32)
    mask = (jnp.arange(seq_len)[None, :] < lengths[:, None]).astype(jnp.int32)  # (B, S)

    path_score, decode_idx = crf_forward(feats, mask, transitions, tag2id)
    decode_idx = jax.block_until_ready(decode_idx)

    _, decode_ref = crf_forward_ref(feats, mask, transitions, tag2id)
    decode_ref = jax.block_until_ready(decode_ref)

    assert decode_idx.shape == (batch, seq_len)
    assert bool(jnp.all(decode_idx == decode_ref)), "Pallas Viterbi decode mismatch vs. JAX reference"
    assert path_score is None  # PyTorch _viterbi_decode returns path_score = None

    print("KERNEL_OK")
</pallas_src>

<mosaic_0001>
module attributes {stable_mosaic.version = 11 : i64} {
  func.func @_viterbi_fwd_kernel(%arg0: i32, %arg1: i32, %arg2: memref<8x8x128xf32, #tpu.memory_space<vmem>>, %arg3: memref<8x1xi32, #tpu.memory_space<vmem>>, %arg4: memref<128x128xf32, #tpu.memory_space<vmem>>, %arg5: memref<8x8x128xi32, #tpu.memory_space<vmem>>, %arg6: memref<8x128xf32, #tpu.memory_space<vmem>>, %arg7: memref<8x128xf32, #tpu.memory_space<vmem>>) attributes {dimension_semantics = [#tpu.dimension_semantics<parallel>, #tpu.dimension_semantics<arbitrary>], iteration_bounds = array<i64: 1, 1>, scalar_prefetch = 0 : i64, scratch_operands = 1 : i64, tpu.core_type = #tpu.core_type<tc>, window_params = [{transform_indices = @transform_0, window_bounds = array<i64: 8, 8, 128>}, {transform_indices = @transform_1, window_bounds = array<i64: 8, 1>}, {pipeline_mode = #tpu.pipeline_mode<synchronous>, transform_indices = @transform_2, window_bounds = array<i64: 128, 128>}, {transform_indices = @transform_3, window_bounds = array<i64: 8, 8, 128>}, {transform_indices = @transform_4, window_bounds = array<i64: 8, 128>}]} {
    %c0 = arith.constant 0 : index
    %c0_0 = arith.constant 0 : index
    %0 = vector.load %arg4[%c0, %c0_0] : memref<128x128xf32, #tpu.memory_space<vmem>>, vector<128x128xf32>
    %c0_1 = arith.constant 0 : index
    %c0_2 = arith.constant 0 : index
    %1 = vector.load %arg3[%c0_1, %c0_2] : memref<8x1xi32, #tpu.memory_space<vmem>>, vector<8x1xi32>
    %2 = vector.extract_strided_slice %0 {offsets = [4, 0], sizes = [1, 128], strides = [1, 1]} : vector<128x128xf32> to vector<1x128xf32>
    %c0_i32 = arith.constant 0 : i32
    %3 = arith.cmpi eq, %arg1, %c0_i32 : i32
    %4 = arith.extui %3 : i1 to i32
    %c0_i32_3 = arith.constant 0 : i32
    %5 = arith.cmpi ne, %4, %c0_i32_3 : i32
    scf.if %5 {
      %cst = arith.constant 0.000000e+00 : f32
      %694 = vector.broadcast %cst : f32 to vector<8x128xf32>
      %c0_180 = arith.constant 0 : index
      %c0_181 = arith.constant 0 : index
      %695 = vector.load %arg7[%c0_180, %c0_181] : memref<8x128xf32, #tpu.memory_space<vmem>>, vector<8x128xf32>
      tpu.vector_store %arg7[%c0_180, %c0_181], %694 {strides = array<i32>} : memref<8x128xf32, #tpu.memory_space<vmem>>, vector<8x128xf32>,
      %cst_182 = arith.constant 0.000000e+00 : f32
      %696 = vector.broadcast %cst_182 : f32 to vector<8x128xf32>
      %c0_183 = arith.constant 0 : index
      %c0_184 = arith.constant 0 : index
      %697 = vector.load %arg6[%c0_183, %c0_184] : memref<8x128xf32, #tpu.memory_space<vmem>>, vector<8x128xf32>
      tpu.vector_store %arg6[%c0_183, %c0_184], %696 {strides = array<i32>} : memref<8x128xf32, #tpu.memory_space<vmem>>, vector<8x128xf32>,
    } else {
    }
    %c0_i32_4 = arith.constant 0 : i32
    %c8_i32 = arith.constant 8 : i32
    %6 = arith.muli %arg1, %c8_i32 : i32
    %7 = arith.addi %6, %c0_i32_4 : i32
    %8 = arith.index_cast %c0_i32_4 : i32 to index
    %c0_5 = arith.constant 0 : index
    %c0_6 = arith.constant 0 : index
    %9 = vector.load %arg2[%8, %c0_5, %c0_6] : memref<8x8x128xf32, #tpu.memory_space<vmem>>, vector<1x8x128xf32>
    %10 = vector.shape_cast %9 : vector<1x8x128xf32> to vector<8x128xf32>
    %c0_7 = arith.constant 0 : index
    %c0_8 = arith.constant 0 : index
    %11 = vector.load %arg7[%c0_7, %c0_8] : memref<8x128xf32, #tpu.memory_space<vmem>>, vector<8x128xf32>
    %12 = vector.extract_strided_slice %11 {offsets = [0, 0], sizes = [8, 1], strides = [1, 1]} : vector<8x128xf32> to vector<8x1xf32>
    %13 = vector.extract_strided_slice %0 {offsets = [0, 0], sizes = [1, 128], strides = [1, 1]} : vector<128x128xf32> to vector<1x128xf32>
    %14 = vector.broadcast %12 : vector<8x1xf32> to vector<8x128xf32>
    %15 = vector.broadcast %13 : vector<1x128xf32> to vector<8x128xf32>
    %16 = arith.addf %14, %15 : vector<8x128xf32>
    %17 = arith.addf %16, %10 : vector<8x128xf32>
    %c0_i32_9 = arith.constant 0 : i32
    %18 = vector.broadcast %c0_i32_9 : i32 to vector<8x128xi32>
    %19 = vector.extract_strided_slice %11 {offsets = [0, 1], sizes = [8, 1], strides = [1, 1]} : vector<8x128xf32> to vector<8x1xf32>
    %20 = vector.extract_strided_slice %0 {offsets = [1, 0], sizes = [1, 128], strides = [1, 1]} : vector<128x128xf32> to vector<1x128xf32>
    %21 = vector.broadcast %19 : vector<8x1xf32> to vector<8x128xf32>
    %22 = vector.broadcast %20 : vector<1x128xf32> to vector<8x128xf32>
    %23 = arith.addf %21, %22 : vector<8x128xf32>
    %24 = arith.addf %23, %10 : vector<8x128xf32>
    %25 = arith.cmpf ogt, %24, %17 : vector<8x128xf32>
    %26 = arith.select %25, %24, %17 : vector<8x128xi1>, vector<8x128xf32>
    %c1_i32 = arith.constant 1 : i32
    %27 = vector.broadcast %c1_i32 : i32 to vector<8x128xi32>
    %28 = arith.select %25, %27, %18 : vector<8x128xi1>, vector<8x128xi32>
    %29 = vector.extract_strided_slice %11 {offsets = [0, 2], sizes = [8, 1], strides = [1, 1]} : vector<8x128xf32> to vector<8x1xf32>
    %30 = vector.extract_strided_slice %0 {offsets = [2, 0], sizes = [1, 128], strides = [1, 1]} : vector<128x128xf32> to vector<1x128xf32>
    %31 = vector.broadcast %29 : vector<8x1xf32> to vector<8x128xf32>
    %32 = vector.broadcast %30 : vector<1x128xf32> to vector<8x128xf32>
    %33 = arith.addf %31, %32 : vector<8x128xf32>
    %34 = arith.addf %33, %10 : vector<8x128xf32>
    %35 = arith.cmpf ogt, %34, %26 : vector<8x128xf32>
    %36 = arith.select %35, %34, %26 : vector<8x128xi1>, vector<8x128xf32>
    %c2_i32 = arith.constant 2 : i32
    %37 = vector.broadcast %c2_i32 : i32 to vector<8x128xi32>
    %38 = arith.select %35, %37, %28 : vector<8x128xi1>, vector<8x128xi32>
    %39 = vector.extract_strided_slice %11 {offsets = [0, 3], sizes = [8, 1], strides = [1, 1]} : vector<8x128xf32> to vector<8x1xf32>
    %40 = vector.extract_strided_slice %0 {offsets = [3, 0], sizes = [1, 128], strides = [1, 1]} : vector<128x128xf32> to vector<1x128xf32>
    %41 = vector.broadcast %39 : vector<8x1xf32> to vector<8x128xf32>
    %42 = vector.broadcast %40 : vector<1x128xf32> to vector<8x128xf32>
    %43 = arith.addf %41, %42 : vector<8x128xf32>
    %44 = arith.addf %43, %10 : vector<8x128xf32>
    %45 = arith.cmpf ogt, %44, %36 : vector<8x128xf32>
    %46 = arith.select %45, %44, %36 : vector<8x128xi1>, vector<8x128xf32>
    %c3_i32 = arith.constant 3 : i32
    %47 = vector.broadcast %c3_i32 : i32 to vector<8x128xi32>
    %48 = arith.select %45, %47, %38 : vector<8x128xi1>, vector<8x128xi32>
    %49 = vector.extract_strided_slice %11 {offsets = [0, 4], sizes = [8, 1], strides = [1, 1]} : vector<8x128xf32> to vector<8x1xf32>
    %50 = vector.extract_strided_slice %0 {offsets = [4, 0], sizes = [1, 128], strides = [1, 1]} : vector<128x128xf32> to vector<1x128xf32>
    %51 = vector.broadcast %49 : vector<8x1xf32> to vector<8x128xf32>
    %52 = vector.broadcast %50 : vector<1x128xf32> to vector<8x128xf32>
    %53 = arith.addf %51, %52 : vector<8x128xf32>
    %54 = arith.addf %53, %10 : vector<8x128xf32>
    %55 = arith.cmpf ogt, %54, %46 : vector<8x128xf32>
    %56 = arith.select %55, %54, %46 : vector<8x128xi1>, vector<8x128xf32>
    %c4_i32 = arith.constant 4 : i32
    %57 = vector.broadcast %c4_i32 : i32 to vector<8x128xi32>
    %58 = arith.select %55, %57, %48 : vector<8x128xi1>, vector<8x128xi32>
    %59 = vector.extract_strided_slice %11 {offsets = [0, 5], sizes = [8, 1], strides = [1, 1]} : vector<8x128xf32> to vector<8x1xf32>
    %60 = vector.extract_strided_slice %0 {offsets = [5, 0], sizes = [1, 128], strides = [1, 1]} : vector<128x128xf32> to vector<1x128xf32>
    %61 = vector.broadcast %59 : vector<8x1xf32> to vector<8x128xf32>
    %62 = vector.broadcast %60 : vector<1x128xf32> to vector<8x128xf32>
    %63 = arith.addf %61, %62 : vector<8x128xf32>
    %64 = arith.addf %63, %10 : vector<8x128xf32>
    %65 = arith.cmpf ogt, %64, %56 : vector<8x128xf32>
    %66 = arith.select %65, %64, %56 : vector<8x128xi1>, vector<8x128xf32>
    %c5_i32 = arith.constant 5 : i32
    %67 = vector.broadcast %c5_i32 : i32 to vector<8x128xi32>
    %68 = arith.select %65, %67, %58 : vector<8x128xi1>, vector<8x128xi32>
    %c0_i32_10 = arith.constant 0 : i32
    %69 = arith.cmpi eq, %7, %c0_i32_10 : i32
    %70 = vector.broadcast %2 : vector<1x128xf32> to vector<8x128xf32>
    %71 = arith.addf %10, %70 : vector<8x128xf32>
    %72 = arith.select %69, %71, %66 : vector<8x128xf32>
    %73 = vector.broadcast %7 : i32 to vector<8x1xi32>
    %74 = arith.cmpi sgt, %1, %73 : vector<8x1xi32>
    %true = arith.constant true
    %75 = arith.xori %69, %true : i1
    %76 = vector.broadcast %75 : i1 to vector<8x1xi1>
    %77 = arith.andi %74, %76 : vector<8x1xi1>
    %c0_i32_11 = arith.constant 0 : i32
    %78 = vector.shape_cast %77 : vector<8x1xi1> to vector<8x1xi1>
    %79 = vector.broadcast %78 : vector<8x1xi1> to vector<8x128xi1>
    %80 = vector.broadcast %c0_i32_11 : i32 to vector<8x128xi32>
    %81 = arith.select %79, %68, %80 : vector<8x128xi1>, vector<8x128xi32>
    %c0_12 = arith.constant 0 : index
    %c0_13 = arith.constant 0 : index
    %82 = vector.load %arg7[%c0_12, %c0_13] : memref<8x128xf32, #tpu.memory_space<vmem>>, vector<8x128xf32>
    tpu.vector_store %arg7[%c0_12, %c0_13], %72 {strides = array<i32>} : memref<8x128xf32, #tpu.memory_space<vmem>>, vector<8x128xf32>,
    %c0_14 = arith.constant 0 : index
    %c0_15 = arith.constant 0 : index
    %83 = vector.load %arg6[%c0_14, %c0_15] : memref<8x128xf32, #tpu.memory_space<vmem>>, vector<8x128xf32>
    %84 = vector.shape_cast %74 : vector<8x1xi1> to vector<8x1xi1>
    %85 = vector.broadcast %84 : vector<8x1xi1> to vector<8x128xi1>
    %86 = arith.select %85, %72, %83 : vector<8x128xi1>, vector<8x128xf32>
    %c0_16 = arith.constant 0 : index
    %c0_17 = arith.constant 0 : index
    %87 = vector.load %arg6[%c0_16, %c0_17] : memref<8x128xf32, #tpu.memory_space<vmem>>, vector<8x128xf32>
    tpu.vector_store %arg6[%c0_16, %c0_17], %86 {strides = array<i32>} : memref<8x128xf32, #tpu.memory_space<vmem>>, vector<8x128xf32>,
    %88 = arith.index_cast %c0_i32_4 : i32 to index
    %c0_18 = arith.constant 0 : index
    %c0_19 = arith.constant 0 : index
    %89 = vector.load %arg5[%88, %c0_18, %c0_19] : memref<8x8x128xi32, #tpu.memory_space<vmem>>, vector<1x8x128xi32>
    %90 = vector.shape_cast %89 : vector<1x8x128xi32> to vector<8x128xi32>
    %91 = vector.shape_cast %81 : vector<8x128xi32> to vector<1x8x128xi32>
    tpu.vector_store %arg5[%88, %c0_18, %c0_19], %91 {strides = array<i32>} : memref<8x8x128xi32, #tpu.memory_space<vmem>>, vector<1x8x128xi32>,
    %c1_i32_20 = arith.constant 1 : i32
    %c8_i32_21 = arith.constant 8 : i32
    %92 = arith.muli %arg1, %c8_i32_21 : i32
    %93 = arith.addi %92, %c1_i32_20 : i32
    %94 = arith.index_cast %c1_i32_20 : i32 to index
    %c0_22 = arith.constant 0 : index
    %c0_23 = arith.constant 0 : index
    %95 = vector.load %arg2[%94, %c0_22, %c0_23] : memref<8x8x128xf32, #tpu.memory_space<vmem>>, vector<1x8x128xf32>
    %96 = vector.shape_cast %95 : vector<1x8x128xf32> to vector<8x128xf32>
    %c0_24 = arith.constant 0 : index
    %c0_25 = arith.constant 0 : index
    %97 = vector.load %arg7[%c0_24, %c0_25] : memref<8x128xf32, #tpu.memory_space<vmem>>, vector<8x128xf32>
    %98 = vector.extract_strided_slice %97 {offsets = [0, 0], sizes = [8, 1], strides = [1, 1]} : vector<8x128xf32> to vector<8x1xf32>
    %99 = vector.extract_strided_slice %0 {offsets = [0, 0], sizes = [1, 128], strides = [1, 1]} : vector<128x128xf32> to vector<1x128xf32>
    %100 = vector.broadcast %98 : vector<8x1xf32> to vector<8x128xf32>
    %101 = vector.broadcast %99 : vector<1x128xf32> to vector<8x128xf32>
    %102 = arith.addf %100, %101 : vector<8x128xf32>
    %103 = arith.addf %102, %96 : vector<8x128xf32>
    %c0_i32_26 = arith.constant 0 : i32
    %104 = vector.broadcast %c0_i32_26 : i32 to vector<8x128xi32>
    %105 = vector.extract_strided_slice %97 {offsets = [0, 1], sizes = [8, 1], strides = [1, 1]} : vector<8x128xf32> to vector<8x1xf32>
    %106 = vector.extract_strided_slice %0 {offsets = [1, 0], sizes = [1, 128], strides = [1, 1]} : vector<128x128xf32> to vector<1x128xf32>
    %107 = vector.broadcast %105 : vector<8x1xf32> to vector<8x128xf32>
    %108 = vector.broadcast %106 : vector<1x128xf32> to vector<8x128xf32>
    %109 = arith.addf %107, %108 : vector<8x128xf32>
    %110 = arith.addf %109, %96 : vector<8x128xf32>
    %111 = arith.cmpf ogt, %110, %103 : vector<8x128xf32>
    %112 = arith.select %111, %110, %103 : vector<8x128xi1>, vector<8x128xf32>
    %c1_i32_27 = arith.constant 1 : i32
    %113 = vector.broadcast %c1_i32_27 : i32 to vector<8x128xi32>
    %114 = arith.select %111, %113, %104 : vector<8x128xi1>, vector<8x128xi32>
    %115 = vector.extract_strided_slice %97 {offsets = [0, 2], sizes = [8, 1], strides = [1, 1]} : vector<8x128xf32> to vector<8x1xf32>
    %116 = vector.extract_strided_slice %0 {offsets = [2, 0], sizes = [1, 128], strides = [1, 1]} : vector<128x128xf32> to vector<1x128xf32>
    %117 = vector.broadcast %115 : vector<8x1xf32> to vector<8x128xf32>
    %118 = vector.broadcast %116 : vector<1x128xf32> to vector<8x128xf32>
    %119 = arith.addf %117, %118 : vector<8x128xf32>
    %120 = arith.addf %119, %96 : vector<8x128xf32>
    %121 = arith.cmpf ogt, %120, %112 : vector<8x128xf32>
    %122 = arith.select %121, %120, %112 : vector<8x128xi1>, vector<8x128xf32>
    %c2_i32_28 = arith.constant 2 : i32
    %123 = vector.broadcast %c2_i32_28 : i32 to vector<8x128xi32>
    %124 = arith.select %121, %123, %114 : vector<8x128xi1>, vector<8x128xi32>
    %125 = vector.extract_strided_slice %97 {offsets = [0, 3], sizes = [8, 1], strides = [1, 1]} : vector<8x128xf32> to vector<8x1xf32>
    %126 = vector.extract_strided_slice %0 {offsets = [3, 0], sizes = [1, 128], strides = [1, 1]} : vector<128x128xf32> to vector<1x128xf32>
    %127 = vector.broadcast %125 : vector<8x1xf32> to vector<8x128xf32>
    %128 = vector.broadcast %126 : vector<1x128xf32> to vector<8x128xf32>
    %129 = arith.addf %127, %128 : vector<8x128xf32>
    %130 = arith.addf %129, %96 : vector<8x128xf32>
    %131 = arith.cmpf ogt, %130, %122 : vector<8x128xf32>
    %132 = arith.select %131, %130, %122 : vector<8x128xi1>, vector<8x128xf32>
    %c3_i32_29 = arith.constant 3 : i32
    %133 = vector.broadcast %c3_i32_29 : i32 to vector<8x128xi32>
    %134 = arith.select %131, %133, %124 : vector<8x128xi1>, vector<8x128xi32>
    %135 = vector.extract_strided_slice %97 {offsets = [0, 4], sizes = [8, 1], strides = [1, 1]} : vector<8x128xf32> to vector<8x1xf32>
    %136 = vector.extract_strided_slice %0 {offsets = [4, 0], sizes = [1, 128], strides = [1, 1]} : vector<128x128xf32> to vector<1x128xf32>
    %137 = vector.broadcast %135 : vector<8x1xf32> to vector<8x128xf32>
    %138 = vector.broadcast %136 : vector<1x128xf32> to vector<8x128xf32>
    %139 = arith.addf %137, %138 : vector<8x128xf32>
    %140 = arith.addf %139, %96 : vector<8x128xf32>
    %141 = arith.cmpf ogt, %140, %132 : vector<8x128xf32>
    %142 = arith.select %141, %140, %132 : vector<8x128xi1>, vector<8x128xf32>
    %c4_i32_30 = arith.constant 4 : i32
    %143 = vector.broadcast %c4_i32_30 : i32 to vector<8x128xi32>
    %144 = arith.select %141, %143, %134 : vector<8x128xi1>, vector<8x128xi32>
    %145 = vector.extract_strided_slice %97 {offsets = [0, 5], sizes = [8, 1], strides = [1, 1]} : vector<8x128xf32> to vector<8x1xf32>
    %146 = vector.extract_strided_slice %0 {offsets = [5, 0], sizes = [1, 128], strides = [1, 1]} : vector<128x128xf32> to vector<1x128xf32>
    %147 = vector.broadcast %145 : vector<8x1xf32> to vector<8x128xf32>
    %148 = vector.broadcast %146 : vector<1x128xf32> to vector<8x128xf32>
    %149 = arith.addf %147, %148 : vector<8x128xf32>
    %150 = arith.addf %149, %96 : vector<8x128xf32>
    %151 = arith.cmpf ogt, %150, %142 : vector<8x128xf32>
    %152 = arith.select %151, %150, %142 : vector<8x128xi1>, vector<8x128xf32>
    %c5_i32_31 = arith.constant 5 : i32
    %153 = vector.broadcast %c5_i32_31 : i32 to vector<8x128xi32>
    %154 = arith.select %151, %153, %144 : vector<8x128xi1>, vector<8x128xi32>
    %c0_i32_32 = arith.constant 0 : i32
    %155 = arith.cmpi eq, %93, %c0_i32_32 : i32
    %156 = vector.broadcast %2 : vector<1x128xf32> to vector<8x128xf32>
    %157 = arith.addf %96, %156 : vector<8x128xf32>
    %158 = arith.select %155, %157, %152 : vector<8x128xf32>
    %159 = vector.broadcast %93 : i32 to vector<8x1xi32>
    %160 = arith.cmpi sgt, %1, %159 : vector<8x1xi32>
    %true_33 = arith.constant true
    %161 = arith.xori %155, %true_33 : i1
    %162 = vector.broadcast %161 : i1 to vector<8x1xi1>
    %163 = arith.andi %160, %162 : vector<8x1xi1>
    %c0_i32_34 = arith.constant 0 : i32
    %164 = vector.shape_cast %163 : vector<8x1xi1> to vector<8x1xi1>
    %165 = vector.broadcast %164 : vector<8x1xi1> to vector<8x128xi1>
    %166 = vector.broadcast %c0_i32_34 : i32 to vector<8x128xi32>
    %167 = arith.select %165, %154, %166 : vector<8x128xi1>, vector<8x128xi32>
    %c0_35 = arith.constant 0 : index
    %c0_36 = arith.constant 0 : index
    %168 = vector.load %arg7[%c0_35, %c0_36] : memref<8x128xf32, #tpu.memory_space<vmem>>, vector<8x128xf32>
    tpu.vector_store %arg7[%c0_35, %c0_36], %158 {strides = array<i32>} : memref<8x128xf32, #tpu.memory_space<vmem>>, vector<8x128xf32>,
    %c0_37 = arith.constant 0 : index
    %c0_38 = arith.constant 0 : index
    %169 = vector.load %arg6[%c0_37, %c0_38] : memref<8x128xf32, #tpu.memory_space<vmem>>, vector<8x128xf32>
    %170 = vector.shape_cast %160 : vector<8x1xi1> to vector<8x1xi1>
    %171 = vector.broadcast %170 : vector<8x1xi1> to vector<8x128xi1>
    %172 = arith.select %171, %158, %169 : vector<8x128xi1>, vector<8x128xf32>
    %c0_39 = arith.constant 0 : index
    %c0_40 = arith.constant 0 : index
    %173 = vector.load %arg6[%c0_39, %c0_40] : memref<8x128xf32, #tpu.memory_space<vmem>>, vector<8x128xf32>
    tpu.vector_store %arg6[%c0_39, %c0_40], %172 {strides = array<i32>} : memref<8x128xf32, #tpu.memory_space<vmem>>, vector<8x128xf32>,
    %174 = arith.index_cast %c1_i32_20 : i32 to index
    %c0_41 = arith.constant 0 : index
    %c0_42 = arith.constant 0 : index
    %175 = vector.load %arg5[%174, %c0_41, %c0_42] : memref<8x8x128xi32, #tpu.memory_space<vmem>>, vector<1x8x128xi32>
    %176 = vector.shape_cast %175 : vector<1x8x128xi32> to vector<8x128xi32>
    %177 = vector.shape_cast %167 : vector<8x128xi32> to vector<1x8x128xi32>
    tpu.vector_store %arg5[%174, %c0_41, %c0_42], %177 {strides = array<i32>} : memref<8x8x128xi32, #tpu.memory_space<vmem>>, vector<1x8x128xi32>,
    %c2_i32_43 = arith.constant 2 : i32
    %c8_i32_44 = arith.constant 8 : i32
    %178 = arith.muli %arg1, %c8_i32_44 : i32
    %179 = arith.addi %178, %c2_i32_43 : i32
    %180 = arith.index_cast %c2_i32_43 : i32 to index
    %c0_45 = arith.constant 0 : index
    %c0_46 = arith.constant 0 : index
    %181 = vector.load %arg2[%180, %c0_45, %c0_46] : memref<8x8x128xf32, #tpu.memory_space<vmem>>, vector<1x8x128xf32>
    %182 = vector.shape_cast %181 : vector<1x8x128xf32> to vector<8x128xf32>
    %c0_47 = arith.constant 0 : index
    %c0_48 = arith.constant 0 : index
    %183 = vector.load %arg7[%c0_47, %c0_48] : memref<8x128xf32, #tpu.memory_space<vmem>>, vector<8x128xf32>
    %184 = vector.extract_strided_slice %183 {offsets = [0, 0], sizes = [8, 1], strides = [1, 1]} : vector<8x128xf32> to vector<8x1xf32>
    %185 = vector.extract_strided_slice %0 {offsets = [0, 0], sizes = [1, 128], strides = [1, 1]} : vector<128x128xf32> to vector<1x128xf32>
    %186 = vector.broadcast %184 : vector<8x1xf32> to vector<8x128xf32>
    %187 = vector.broadcast %185 : vector<1x128xf32> to vector<8x128xf32>
    %188 = arith.addf %186, %187 : vector<8x128xf32>
    %189 = arith.addf %188, %182 : vector<8x128xf32>
    %c0_i32_49 = arith.constant 0 : i32
    %190 = vector.broadcast %c0_i32_49 : i32 to vector<8x128xi32>
    %191 = vector.extract_strided_slice %183 {offsets = [0, 1], sizes = [8, 1], strides = [1, 1]} : vector<8x128xf32> to vector<8x1xf32>
    %192 = vector.extract_strided_slice %0 {offsets = [1, 0], sizes = [1, 128], strides = [1, 1]} : vector<128x128xf32> to vector<1x128xf32>
    %193 = vector.broadcast %191 : vector<8x1xf32> to vector<8x128xf32>
    %194 = vector.broadcast %192 : vector<1x128xf32> to vector<8x128xf32>
    %195 = arith.addf %193, %194 : vector<8x128xf32>
    %196 = arith.addf %195, %182 : vector<8x128xf32>
    %197 = arith.cmpf ogt, %196, %189 : vector<8x128xf32>
    %198 = arith.select %197, %196, %189 : vector<8x128xi1>, vector<8x128xf32>
    %c1_i32_50 = arith.constant 1 : i32
    %199 = vector.broadcast %c1_i32_50 : i32 to vector<8x128xi32>
    %200 = arith.select %197, %199, %190 : vector<8x128xi1>, vector<8x128xi32>
    %201 = vector.extract_strided_slice %183 {offsets = [0, 2], sizes = [8, 1], strides = [1, 1]} : vector<8x128xf32> to vector<8x1xf32>
    %202 = vector.extract_strided_slice %0 {offsets = [2, 0], sizes = [1, 128], strides = [1, 1]} : vector<128x128xf32> to vector<1x128xf32>
    %203 = vector.broadcast %201 : vector<8x1xf32> to vector<8x128xf32>
    %204 = vector.broadcast %202 : vector<1x128xf32> to vector<8x128xf32>
    %205 = arith.addf %203, %204 : vector<8x128xf32>
    %206 = arith.addf %205, %182 : vector<8x128xf32>
    %207 = arith.cmpf ogt, %206, %198 : vector<8x128xf32>
    %208 = arith.select %207, %206, %198 : vector<8x128xi1>, vector<8x128xf32>
    %c2_i32_51 = arith.constant 2 : i32
    %209 = vector.broadcast %c2_i32_51 : i32 to vector<8x128xi32>
    %210 = arith.select %207, %209, %200 : vector<8x128xi1>, vector<8x128xi32>
    %211 = vector.extract_strided_slice %183 {offsets = [0, 3], sizes = [8, 1], strides = [1, 1]} : vector<8x128xf32> to vector<8x1xf32>
    %212 = vector.extract_strided_slice %0 {offsets = [3, 0], sizes = [1, 128], strides = [1, 1]} : vector<128x128xf32> to vector<1x128xf32>
    %213 = vector.broadcast %211 : vector<8x1xf32> to vector<8x128xf32>
    %214 = vector.broadcast %212 : vector<1x128xf32> to vector<8x128xf32>
    %215 = arith.addf %213, %214 : vector<8x128xf32>
    %216 = arith.addf %215, %182 : vector<8x128xf32>
    %217 = arith.cmpf ogt, %216, %208 : vector<8x128xf32>
    %218 = arith.select %217, %216, %208 : vector<8x128xi1>, vector<8x128xf32>
    %c3_i32_52 = arith.constant 3 : i32
    %219 = vector.broadcast %c3_i32_52 : i32 to vector<8x128xi32>
    %220 = arith.select %217, %219, %210 : vector<8x128xi1>, vector<8x128xi32>
    %221 = vector.extract_strided_slice %183 {offsets = [0, 4], sizes = [8, 1], strides = [1, 1]} : vector<8x128xf32> to vector<8x1xf32>
    %222 = vector.extract_strided_slice %0 {offsets = [4, 0], sizes = [1, 128], strides = [1, 1]} : vector<128x128xf32> to vector<1x128xf32>
    %223 = vector.broadcast %221 : vector<8x1xf32> to vector<8x128xf32>
    %224 = vector.broadcast %222 : vector<1x128xf32> to vector<8x128xf32>
    %225 = arith.addf %223, %224 : vector<8x128xf32>
    %226 = arith.addf %225, %182 : vector<8x128xf32>
    %227 = arith.cmpf ogt, %226, %218 : vector<8x128xf32>
    %228 = arith.select %227, %226, %218 : vector<8x128xi1>, vector<8x128xf32>
    %c4_i32_53 = arith.constant 4 : i32
    %229 = vector.broadcast %c4_i32_53 : i32 to vector<8x128xi32>
    %230 = arith.select %227, %229, %220 : vector<8x128xi1>, vector<8x128xi32>
    %231 = vector.extract_strided_slice %183 {offsets = [0, 5], sizes = [8, 1], strides = [1, 1]} : vector<8x128xf32> to vector<8x1xf32>
    %232 = vector.extract_strided_slice %0 {offsets = [5, 0], sizes = [1, 128], strides = [1, 1]} : vector<128x128xf32> to vector<1x128xf32>
    %233 = vector.broadcast %231 : vector<8x1xf32> to vector<8x128xf32>
    %234 = vector.broadcast %232 : vector<1x128xf32> to vector<8x128xf32>
    %235 = arith.addf %233, %234 : vector<8x128xf32>
    %236 = arith.addf %235, %182 : vector<8x128xf32>
    %237 = arith.cmpf ogt, %236, %228 : vector<8x128xf32>
    %238 = arith.select %237, %236, %228 : vector<8x128xi1>, vector<8x128xf32>
    %c5_i32_54 = arith.constant 5 : i32
    %239 = vector.broadcast %c5_i32_54 : i32 to vector<8x128xi32>
    %240 = arith.select %237, %239, %230 : vector<8x128xi1>, vector<8x128xi32>
    %c0_i32_55 = arith.constant 0 : i32
    %241 = arith.cmpi eq, %179, %c0_i32_55 : i32
    %242 = vector.broadcast %2 : vector<1x128xf32> to vector<8x128xf32>
    %243 = arith.addf %182, %242 : vector<8x128xf32>
    %244 = arith.select %241, %243, %238 : vector<8x128xf32>
    %245 = vector.broadcast %179 : i32 to vector<8x1xi32>
    %246 = arith.cmpi sgt, %1, %245 : vector<8x1xi32>
    %true_56 = arith.constant true
    %247 = arith.xori %241, %true_56 : i1
    %248 = vector.broadcast %247 : i1 to vector<8x1xi1>
    %249 = arith.andi %246, %248 : vector<8x1xi1>
    %c0_i32_57 = arith.constant 0 : i32
    %250 = vector.shape_cast %249 : vector<8x1xi1> to vector<8x1xi1>
    %251 = vector.broadcast %250 : vector<8x1xi1> to vector<8x128xi1>
    %252 = vector.broadcast %c0_i32_57 : i32 to vector<8x128xi32>
    %253 = arith.select %251, %240, %252 : vector<8x128xi1>, vector<8x128xi32>
    %c0_58 = arith.constant 0 : index
    %c0_59 = arith.constant 0 : index
    %254 = vector.load %arg7[%c0_58, %c0_59] : memref<8x128xf32, #tpu.memory_space<vmem>>, vector<8x128xf32>
    tpu.vector_store %arg7[%c0_58, %c0_59], %244 {strides = array<i32>} : memref<8x128xf32, #tpu.memory_space<vmem>>, vector<8x128xf32>,
    %c0_60 = arith.constant 0 : index
    %c0_61 = arith.constant 0 : index
    %255 = vector.load %arg6[%c0_60, %c0_61] : memref<8x128xf32, #tpu.memory_space<vmem>>, vector<8x128xf32>
    %256 = vector.shape_cast %246 : vector<8x1xi1> to vector<8x1xi1>
    %257 = vector.broadcast %256 : vector<8x1xi1> to vector<8x128xi1>
    %258 = arith.select %257, %244, %255 : vector<8x128xi1>, vector<8x128xf32>
    %c0_62 = arith.constant 0 : index
    %c0_63 = arith.constant 0 : index
    %259 = vector.load %arg6[%c0_62, %c0_63] : memref<8x128xf32, #tpu.memory_space<vmem>>, vector<8x128xf32>
    tpu.vector_store %arg6[%c0_62, %c0_63], %258 {strides = array<i32>} : memref<8x128xf32, #tpu.memory_space<vmem>>, vector<8x128xf32>,
    %260 = arith.index_cast %c2_i32_43 : i32 to index
    %c0_64 = arith.constant 0 : index
    %c0_65 = arith.constant 0 : index
    %261 = vector.load %arg5[%260, %c0_64, %c0_65] : memref<8x8x128xi32, #tpu.memory_space<vmem>>, vector<1x8x128xi32>
    %262 = vector.shape_cast %261 : vector<1x8x128xi32> to vector<8x128xi32>
    %263 = vector.shape_cast %253 : vector<8x128xi32> to vector<1x8x128xi32>
    tpu.vector_store %arg5[%260, %c0_64, %c0_65], %263 {strides = array<i32>} : memref<8x8x128xi32, #tpu.memory_space<vmem>>, vector<1x8x128xi32>,
    %c3_i32_66 = arith.constant 3 : i32
    %c8_i32_67 = arith.constant 8 : i32
    %264 = arith.muli %arg1, %c8_i32_67 : i32
    %265 = arith.addi %264, %c3_i32_66 : i32
    %266 = arith.index_cast %c3_i32_66 : i32 to index
    %c0_68 = arith.constant 0 : index
    %c0_69 = arith.constant 0 : index
    %267 = vector.load %arg2[%266, %c0_68, %c0_69] : memref<8x8x128xf32, #tpu.memory_space<vmem>>, vector<1x8x128xf32>
    %268 = vector.shape_cast %267 : vector<1x8x128xf32> to vector<8x128xf32>
    %c0_70 = arith.constant 0 : index
    %c0_71 = arith.constant 0 : index
    %269 = vector.load %arg7[%c0_70, %c0_71] : memref<8x128xf32, #tpu.memory_space<vmem>>, vector<8x128xf32>
    %270 = vector.extract_strided_slice %269 {offsets = [0, 0], sizes = [8, 1], strides = [1, 1]} : vector<8x128xf32> to vector<8x1xf32>
    %271 = vector.extract_strided_slice %0 {offsets = [0, 0], sizes = [1, 128], strides = [1, 1]} : vector<128x128xf32> to vector<1x128xf32>
    %272 = vector.broadcast %270 : vector<8x1xf32> to vector<8x128xf32>
    %273 = vector.broadcast %271 : vector<1x128xf32> to vector<8x128xf32>
    %274 = arith.addf %272, %273 : vector<8x128xf32>
    %275 = arith.addf %274, %268 : vector<8x128xf32>
    %c0_i32_72 = arith.constant 0 : i32
    %276 = vector.broadcast %c0_i32_72 : i32 to vector<8x128xi32>
    %277 = vector.extract_strided_slice %269 {offsets = [0, 1], sizes = [8, 1], strides = [1, 1]} : vector<8x128xf32> to vector<8x1xf32>
    %278 = vector.extract_strided_slice %0 {offsets = [1, 0], sizes = [1, 128], strides = [1, 1]} : vector<128x128xf32> to vector<1x128xf32>
    %279 = vector.broadcast %277 : vector<8x1xf32> to vector<8x128xf32>
    %280 = vector.broadcast %278 : vector<1x128xf32> to vector<8x128xf32>
    %281 = arith.addf %279, %280 : vector<8x128xf32>
    %282 = arith.addf %281, %268 : vector<8x128xf32>
    %283 = arith.cmpf ogt, %282, %275 : vector<8x128xf32>
    %284 = arith.select %283, %282, %275 : vector<8x128xi1>, vector<8x128xf32>
    %c1_i32_73 = arith.constant 1 : i32
    %285 = vector.broadcast %c1_i32_73 : i32 to vector<8x128xi32>
    %286 = arith.select %283, %285, %276 : vector<8x128xi1>, vector<8x128xi32>
    %287 = vector.extract_strided_slice %269 {offsets = [0, 2], sizes = [8, 1], strides = [1, 1]} : vector<8x128xf32> to vector<8x1xf32>
    %288 = vector.extract_strided_slice %0 {offsets = [2, 0], sizes = [1, 128], strides = [1, 1]} : vector<128x128xf32> to vector<1x128xf32>
    %289 = vector.broadcast %287 : vector<8x1xf32> to vector<8x128xf32>
    %290 = vector.broadcast %288 : vector<1x128xf32> to vector<8x128xf32>
    %291 = arith.addf %289, %290 : vector<8x128xf32>
    %292 = arith.addf %291, %268 : vector<8x128xf32>
    %293 = arith.cmpf ogt, %292, %284 : vector<8x128xf32>
    %294 = arith.select %293, %292, %284 : vector<8x128xi1>, vector<8x128xf32>
    %c2_i32_74 = arith.constant 2 : i32
    %295 = vector.broadcast %c2_i32_74 : i32 to vector<8x128xi32>
    %296 = arith.select %293, %295, %286 : vector<8x128xi1>, vector<8x128xi32>
    %297 = vector.extract_strided_slice %269 {offsets = [0, 3], sizes = [8, 1], strides = [1, 1]} : vector<8x128xf32> to vector<8x1xf32>
    %298 = vector.extract_strided_slice %0 {offsets = [3, 0], sizes = [1, 128], strides = [1, 1]} : vector<128x128xf32> to vector<1x128xf32>
    %299 = vector.broadcast %297 : vector<8x1xf32> to vector<8x128xf32>
    %300 = vector.broadcast %298 : vector<1x128xf32> to vector<8x128xf32>
    %301 = arith.addf %299, %300 : vector<8x128xf32>
    %302 = arith.addf %301, %268 : vector<8x128xf32>
    %303 = arith.cmpf ogt, %302, %294 : vector<8x128xf32>
    %304 = arith.select %303, %302, %294 : vector<8x128xi1>, vector<8x128xf32>
    %c3_i32_75 = arith.constant 3 : i32
    %305 = vector.broadcast %c3_i32_75 : i32 to vector<8x128xi32>
    %306 = arith.select %303, %305, %296 : vector<8x128xi1>, vector<8x128xi32>
    %307 = vector.extract_strided_slice %269 {offsets = [0, 4], sizes = [8, 1], strides = [1, 1]} : vector<8x128xf32> to vector<8x1xf32>
    %308 = vector.extract_strided_slice %0 {offsets = [4, 0], sizes = [1, 128], strides = [1, 1]} : vector<128x128xf32> to vector<1x128xf32>
    %309 = vector.broadcast %307 : vector<8x1xf32> to vector<8x128xf32>
    %310 = vector.broadcast %308 : vector<1x128xf32> to vector<8x128xf32>
    %311 = arith.addf %309, %310 : vector<8x128xf32>
    %312 = arith.addf %311, %268 : vector<8x128xf32>
    %313 = arith.cmpf ogt, %312, %304 : vector<8x128xf32>
    %314 = arith.select %313, %312, %304 : vector<8x128xi1>, vector<8x128xf32>
    %c4_i32_76 = arith.constant 4 : i32
    %315 = vector.broadcast %c4_i32_76 : i32 to vector<8x128xi32>
    %316 = arith.select %313, %315, %306 : vector<8x128xi1>, vector<8x128xi32>
    %317 = vector.extract_strided_slice %269 {offsets = [0, 5], sizes = [8, 1], strides = [1, 1]} : vector<8x128xf32> to vector<8x1xf32>
    %318 = vector.extract_strided_slice %0 {offsets = [5, 0], sizes = [1, 128], strides = [1, 1]} : vector<128x128xf32> to vector<1x128xf32>
    %319 = vector.broadcast %317 : vector<8x1xf32> to vector<8x128xf32>
    %320 = vector.broadcast %318 : vector<1x128xf32> to vector<8x128xf32>
    %321 = arith.addf %319, %320 : vector<8x128xf32>
    %322 = arith.addf %321, %268 : vector<8x128xf32>
    %323 = arith.cmpf ogt, %322, %314 : vector<8x128xf32>
    %324 = arith.select %323, %322, %314 : vector<8x128xi1>, vector<8x128xf32>
    %c5_i32_77 = arith.constant 5 : i32
    %325 = vector.broadcast %c5_i32_77 : i32 to vector<8x128xi32>
    %326 = arith.select %323, %325, %316 : vector<8x128xi1>, vector<8x128xi32>
    %c0_i32_78 = arith.constant 0 : i32
    %327 = arith.cmpi eq, %265, %c0_i32_78 : i32
    %328 = vector.broadcast %2 : vector<1x128xf32> to vector<8x128xf32>
    %329 = arith.addf %268, %328 : vector<8x128xf32>
    %330 = arith.select %327, %329, %324 : vector<8x128xf32>
    %331 = vector.broadcast %265 : i32 to vector<8x1xi32>
    %332 = arith.cmpi sgt, %1, %331 : vector<8x1xi32>
    %true_79 = arith.constant true
    %333 = arith.xori %327, %true_79 : i1
    %334 = vector.broadcast %333 : i1 to vector<8x1xi1>
    %335 = arith.andi %332, %334 : vector<8x1xi1>
    %c0_i32_80 = arith.constant 0 : i32
    %336 = vector.shape_cast %335 : vector<8x1xi1> to vector<8x1xi1>
    %337 = vector.broadcast %336 : vector<8x1xi1> to vector<8x128xi1>
    %338 = vector.broadcast %c0_i32_80 : i32 to vector<8x128xi32>
    %339 = arith.select %337, %326, %338 : vector<8x128xi1>, vector<8x128xi32>
    %c0_81 = arith.constant 0 : index
    %c0_82 = arith.constant 0 : index
    %340 = vector.load %arg7[%c0_81, %c0_82] : memref<8x128xf32, #tpu.memory_space<vmem>>, vector<8x128xf32>
    tpu.vector_store %arg7[%c0_81, %c0_82], %330 {strides = array<i32>} : memref<8x128xf32, #tpu.memory_space<vmem>>, vector<8x128xf32>,
    %c0_83 = arith.constant 0 : index
    %c0_84 = arith.constant 0 : index
    %341 = vector.load %arg6[%c0_83, %c0_84] : memref<8x128xf32, #tpu.memory_space<vmem>>, vector<8x128xf32>
    %342 = vector.shape_cast %332 : vector<8x1xi1> to vector<8x1xi1>
    %343 = vector.broadcast %342 : vector<8x1xi1> to vector<8x128xi1>
    %344 = arith.select %343, %330, %341 : vector<8x128xi1>, vector<8x128xf32>
    %c0_85 = arith.constant 0 : index
    %c0_86 = arith.constant 0 : index
    %345 = vector.load %arg6[%c0_85, %c0_86] : memref<8x128xf32, #tpu.memory_space<vmem>>, vector<8x128xf32>
    tpu.vector_store %arg6[%c0_85, %c0_86], %344 {strides = array<i32>} : memref<8x128xf32, #tpu.memory_space<vmem>>, vector<8x128xf32>,
    %346 = arith.index_cast %c3_i32_66 : i32 to index
    %c0_87 = arith.constant 0 : index
    %c0_88 = arith.constant 0 : index
    %347 = vector.load %arg5[%346, %c0_87, %c0_88] : memref<8x8x128xi32, #tpu.memory_space<vmem>>, vector<1x8x128xi32>
    %348 = vector.shape_cast %347 : vector<1x8x128xi32> to vector<8x128xi32>
    %349 = vector.shape_cast %339 : vector<8x128xi32> to vector<1x8x128xi32>
    tpu.vector_store %arg5[%346, %c0_87, %c0_88], %349 {strides = array<i32>} : memref<8x8x128xi32, #tpu.memory_space<vmem>>, vector<1x8x128xi32>,
    %c4_i32_89 = arith.constant 4 : i32
    %c8_i32_90 = arith.constant 8 : i32
    %350 = arith.muli %arg1, %c8_i32_90 : i32
    %351 = arith.addi %350, %c4_i32_89 : i32
    %352 = arith.index_cast %c4_i32_89 : i32 to index
    %c0_91 = arith.constant 0 : index
    %c0_92 = arith.constant 0 : index
    %353 = vector.load %arg2[%352, %c0_91, %c0_92] : memref<8x8x128xf32, #tpu.memory_space<vmem>>, vector<1x8x128xf32>
    %354 = vector.shape_cast %353 : vector<1x8x128xf32> to vector<8x128xf32>
    %c0_93 = arith.constant 0 : index
    %c0_94 = arith.constant 0 : index
    %355 = vector.load %arg7[%c0_93, %c0_94] : memref<8x128xf32, #tpu.memory_space<vmem>>, vector<8x128xf32>
    %356 = vector.extract_strided_slice %355 {offsets = [0, 0], sizes = [8, 1], strides = [1, 1]} : vector<8x128xf32> to vector<8x1xf32>
    %357 = vector.extract_strided_slice %0 {offsets = [0, 0], sizes = [1, 128], strides = [1, 1]} : vector<128x128xf32> to vector<1x128xf32>
    %358 = vector.broadcast %356 : vector<8x1xf32> to vector<8x128xf32>
    %359 = vector.broadcast %357 : vector<1x128xf32> to vector<8x128xf32>
    %360 = arith.addf %358, %359 : vector<8x128xf32>
    %361 = arith.addf %360, %354 : vector<8x128xf32>
    %c0_i32_95 = arith.constant 0 : i32
    %362 = vector.broadcast %c0_i32_95 : i32 to vector<8x128xi32>
    %363 = vector.extract_strided_slice %355 {offsets = [0, 1], sizes = [8, 1], strides = [1, 1]} : vector<8x128xf32> to vector<8x1xf32>
    %364 = vector.extract_strided_slice %0 {offsets = [1, 0], sizes = [1, 128], strides = [1, 1]} : vector<128x128xf32> to vector<1x128xf32>
    %365 = vector.broadcast %363 : vector<8x1xf32> to vector<8x128xf32>
    %366 = vector.broadcast %364 : vector<1x128xf32> to vector<8x128xf32>
    %367 = arith.addf %365, %366 : vector<8x128xf32>
    %368 = arith.addf %367, %354 : vector<8x128xf32>
    %369 = arith.cmpf ogt, %368, %361 : vector<8x128xf32>
    %370 = arith.select %369, %368, %361 : vector<8x128xi1>, vector<8x128xf32>
    %c1_i32_96 = arith.constant 1 : i32
    %371 = vector.broadcast %c1_i32_96 : i32 to vector<8x128xi32>
    %372 = arith.select %369, %371, %362 : vector<8x128xi1>, vector<8x128xi32>
    %373 = vector.extract_strided_slice %355 {offsets = [0, 2], sizes = [8, 1], strides = [1, 1]} : vector<8x128xf32> to vector<8x1xf32>
    %374 = vector.extract_strided_slice %0 {offsets = [2, 0], sizes = [1, 128], strides = [1, 1]} : vector<128x128xf32> to vector<1x128xf32>
    %375 = vector.broadcast %373 : vector<8x1xf32> to vector<8x128xf32>
    %376 = vector.broadcast %374 : vector<1x128xf32> to vector<8x128xf32>
    %377 = arith.addf %375, %376 : vector<8x128xf32>
    %378 = arith.addf %377, %354 : vector<8x128xf32>
    %379 = arith.cmpf ogt, %378, %370 : vector<8x128xf32>
    %380 = arith.select %379, %378, %370 : vector<8x128xi1>, vector<8x128xf32>
    %c2_i32_97 = arith.constant 2 : i32
    %381 = vector.broadcast %c2_i32_97 : i32 to vector<8x128xi32>
    %382 = arith.select %379, %381, %372 : vector<8x128xi1>, vector<8x128xi32>
    %383 = vector.extract_strided_slice %355 {offsets = [0, 3], sizes = [8, 1], strides = [1, 1]} : vector<8x128xf32> to vector<8x1xf32>
    %384 = vector.extract_strided_slice %0 {offsets = [3, 0], sizes = [1, 128], strides = [1, 1]} : vector<128x128xf32> to vector<1x128xf32>
    %385 = vector.broadcast %383 : vector<8x1xf32> to vector<8x128xf32>
    %386 = vector.broadcast %384 : vector<1x128xf32> to vector<8x128xf32>
    %387 = arith.addf %385, %386 : vector<8x128xf32>
    %388 = arith.addf %387, %354 : vector<8x128xf32>
    %389 = arith.cmpf ogt, %388, %380 : vector<8x128xf32>
    %390 = arith.select %389, %388, %380 : vector<8x128xi1>, vector<8x128xf32>
    %c3_i32_98 = arith.constant 3 : i32
    %391 = vector.broadcast %c3_i32_98 : i32 to vector<8x128xi32>
    %392 = arith.select %389, %391, %382 : vector<8x128xi1>, vector<8x128xi32>
    %393 = vector.extract_strided_slice %355 {offsets = [0, 4], sizes = [8, 1], strides = [1, 1]} : vector<8x128xf32> to vector<8x1xf32>
    %394 = vector.extract_strided_slice %0 {offsets = [4, 0], sizes = [1, 128], strides = [1, 1]} : vector<128x128xf32> to vector<1x128xf32>
    %395 = vector.broadcast %393 : vector<8x1xf32> to vector<8x128xf32>
    %396 = vector.broadcast %394 : vector<1x128xf32> to vector<8x128xf32>
    %397 = arith.addf %395, %396 : vector<8x128xf32>
    %398 = arith.addf %397, %354 : vector<8x128xf32>
    %399 = arith.cmpf ogt, %398, %390 : vector<8x128xf32>
    %400 = arith.select %399, %398, %390 : vector<8x128xi1>, vector<8x128xf32>
    %c4_i32_99 = arith.constant 4 : i32
    %401 = vector.broadcast %c4_i32_99 : i32 to vector<8x128xi32>
    %402 = arith.select %399, %401, %392 : vector<8x128xi1>, vector<8x128xi32>
    %403 = vector.extract_strided_slice %355 {offsets = [0, 5], sizes = [8, 1], strides = [1, 1]} : vector<8x128xf32> to vector<8x1xf32>
    %404 = vector.extract_strided_slice %0 {offsets = [5, 0], sizes = [1, 128], strides = [1, 1]} : vector<128x128xf32> to vector<1x128xf32>
    %405 = vector.broadcast %403 : vector<8x1xf32> to vector<8x128xf32>
    %406 = vector.broadcast %404 : vector<1x128xf32> to vector<8x128xf32>
    %407 = arith.addf %405, %406 : vector<8x128xf32>
    %408 = arith.addf %407, %354 : vector<8x128xf32>
    %409 = arith.cmpf ogt, %408, %400 : vector<8x128xf32>
    %410 = arith.select %409, %408, %400 : vector<8x128xi1>, vector<8x128xf32>
    %c5_i32_100 = arith.constant 5 : i32
    %411 = vector.broadcast %c5_i32_100 : i32 to vector<8x128xi32>
    %412 = arith.select %409, %411, %402 : vector<8x128xi1>, vector<8x128xi32>
    %c0_i32_101 = arith.constant 0 : i32
    %413 = arith.cmpi eq, %351, %c0_i32_101 : i32
    %414 = vector.broadcast %2 : vector<1x128xf32> to vector<8x128xf32>
    %415 = arith.addf %354, %414 : vector<8x128xf32>
    %416 = arith.select %413, %415, %410 : vector<8x128xf32>
    %417 = vector.broadcast %351 : i32 to vector<8x1xi32>
    %418 = arith.cmpi sgt, %1, %417 : vector<8x1xi32>
    %true_102 = arith.constant true
    %419 = arith.xori %413, %true_102 : i1
    %420 = vector.broadcast %419 : i1 to vector<8x1xi1>
    %421 = arith.andi %418, %420 : vector<8x1xi1>
    %c0_i32_103 = arith.constant 0 : i32
    %422 = vector.shape_cast %421 : vector<8x1xi1> to vector<8x1xi1>
    %423 = vector.broadcast %422 : vector<8x1xi1> to vector<8x128xi1>
    %424 = vector.broadcast %c0_i32_103 : i32 to vector<8x128xi32>
    %425 = arith.select %423, %412, %424 : vector<8x128xi1>, vector<8x128xi32>
    %c0_104 = arith.constant 0 : index
    %c0_105 = arith.constant 0 : index
    %426 = vector.load %arg7[%c0_104, %c0_105] : memref<8x128xf32, #tpu.memory_space<vmem>>, vector<8x128xf32>
    tpu.vector_store %arg7[%c0_104, %c0_105], %416 {strides = array<i32>} : memref<8x128xf32, #tpu.memory_space<vmem>>, vector<8x128xf32>,
    %c0_106 = arith.constant 0 : index
    %c0_107 = arith.constant 0 : index
    %427 = vector.load %arg6[%c0_106, %c0_107] : memref<8x128xf32, #tpu.memory_space<vmem>>, vector<8x128xf32>
    %428 = vector.shape_cast %418 : vector<8x1xi1> to vector<8x1xi1>
    %429 = vector.broadcast %428 : vector<8x1xi1> to vector<8x128xi1>
    %430 = arith.select %429, %416, %427 : vector<8x128xi1>, vector<8x128xf32>
    %c0_108 = arith.constant 0 : index
    %c0_109 = arith.constant 0 : index
    %431 = vector.load %arg6[%c0_108, %c0_109] : memref<8x128xf32, #tpu.memory_space<vmem>>, vector<8x128xf32>
    tpu.vector_store %arg6[%c0_108, %c0_109], %430 {strides = array<i32>} : memref<8x128xf32, #tpu.memory_space<vmem>>, vector<8x128xf32>,
    %432 = arith.index_cast %c4_i32_89 : i32 to index
    %c0_110 = arith.constant 0 : index
    %c0_111 = arith.constant 0 : index
    %433 = vector.load %arg5[%432, %c0_110, %c0_111] : memref<8x8x128xi32, #tpu.memory_space<vmem>>, vector<1x8x128xi32>
    %434 = vector.shape_cast %433 : vector<1x8x128xi32> to vector<8x128xi32>
    %435 = vector.shape_cast %425 : vector<8x128xi32> to vector<1x8x128xi32>
    tpu.vector_store %arg5[%432, %c0_110, %c0_111], %435 {strides = array<i32>} : memref<8x8x128xi32, #tpu.memory_space<vmem>>, vector<1x8x128xi32>,
    %c5_i32_112 = arith.constant 5 : i32
    %c8_i32_113 = arith.constant 8 : i32
    %436 = arith.muli %arg1, %c8_i32_113 : i32
    %437 = arith.addi %436, %c5_i32_112 : i32
    %438 = arith.index_cast %c5_i32_112 : i32 to index
    %c0_114 = arith.constant 0 : index
    %c0_115 = arith.constant 0 : index
    %439 = vector.load %arg2[%438, %c0_114, %c0_115] : memref<8x8x128xf32, #tpu.memory_space<vmem>>, vector<1x8x128xf32>
    %440 = vector.shape_cast %439 : vector<1x8x128xf32> to vector<8x128xf32>
    %c0_116 = arith.constant 0 : index
    %c0_117 = arith.constant 0 : index
    %441 = vector.load %arg7[%c0_116, %c0_117] : memref<8x128xf32, #tpu.memory_space<vmem>>, vector<8x128xf32>
    %442 = vector.extract_strided_slice %441 {offsets = [0, 0], sizes = [8, 1], strides = [1, 1]} : vector<8x128xf32> to vector<8x1xf32>
    %443 = vector.extract_strided_slice %0 {offsets = [0, 0], sizes = [1, 128], strides = [1, 1]} : vector<128x128xf32> to vector<1x128xf32>
    %444 = vector.broadcast %442 : vector<8x1xf32> to vector<8x128xf32>
    %445 = vector.broadcast %443 : vector<1x128xf32> to vector<8x128xf32>
    %446 = arith.addf %444, %445 : vector<8x128xf32>
    %447 = arith.addf %446, %440 : vector<8x128xf32>
    %c0_i32_118 = arith.constant 0 : i32
    %448 = vector.broadcast %c0_i32_118 : i32 to vector<8x128xi32>
    %449 = vector.extract_strided_slice %441 {offsets = [0, 1], sizes = [8, 1], strides = [1, 1]} : vector<8x128xf32> to vector<8x1xf32>
    %450 = vector.extract_strided_slice %0 {offsets = [1, 0], sizes = [1, 128], strides = [1, 1]} : vector<128x128xf32> to vector<1x128xf32>
    %451 = vector.broadcast %449 : vector<8x1xf32> to vector<8x128xf32>
    %452 = vector.broadcast %450 : vector<1x128xf32> to vector<8x128xf32>
    %453 = arith.addf %451, %452 : vector<8x128xf32>
    %454 = arith.addf %453, %440 : vector<8x128xf32>
    %455 = arith.cmpf ogt, %454, %447 : vector<8x128xf32>
    %456 = arith.select %455, %454, %447 : vector<8x128xi1>, vector<8x128xf32>
    %c1_i32_119 = arith.constant 1 : i32
    %457 = vector.broadcast %c1_i32_119 : i32 to vector<8x128xi32>
    %458 = arith.select %455, %457, %448 : vector<8x128xi1>, vector<8x128xi32>
    %459 = vector.extract_strided_slice %441 {offsets = [0, 2], sizes = [8, 1], strides = [1, 1]} : vector<8x128xf32> to vector<8x1xf32>
    %460 = vector.extract_strided_slice %0 {offsets = [2, 0], sizes = [1, 128], strides = [1, 1]} : vector<128x128xf32> to vector<1x128xf32>
    %461 = vector.broadcast %459 : vector<8x1xf32> to vector<8x128xf32>
    %462 = vector.broadcast %460 : vector<1x128xf32> to vector<8x128xf32>
    %463 = arith.addf %461, %462 : vector<8x128xf32>
    %464 = arith.addf %463, %440 : vector<8x128xf32>
    %465 = arith.cmpf ogt, %464, %456 : vector<8x128xf32>
    %466 = arith.select %465, %464, %456 : vector<8x128xi1>, vector<8x128xf32>
    %c2_i32_120 = arith.constant 2 : i32
    %467 = vector.broadcast %c2_i32_120 : i32 to vector<8x128xi32>
    %468 = arith.select %465, %467, %458 : vector<8x128xi1>, vector<8x128xi32>
    %469 = vector.extract_strided_slice %441 {offsets = [0, 3], sizes = [8, 1], strides = [1, 1]} : vector<8x128xf32> to vector<8x1xf32>
    %470 = vector.extract_strided_slice %0 {offsets = [3, 0], sizes = [1, 128], strides = [1, 1]} : vector<128x128xf32> to vector<1x128xf32>
    %471 = vector.broadcast %469 : vector<8x1xf32> to vector<8x128xf32>
    %472 = vector.broadcast %470 : vector<1x128xf32> to vector<8x128xf32>
    %473 = arith.addf %471, %472 : vector<8x128xf32>
    %474 = arith.addf %473, %440 : vector<8x128xf32>
    %475 = arith.cmpf ogt, %474, %466 : vector<8x128xf32>
    %476 = arith.select %475, %474, %466 : vector<8x128xi1>, vector<8x128xf32>
    %c3_i32_121 = arith.constant 3 : i32
    %477 = vector.broadcast %c3_i32_121 : i32 to vector<8x128xi32>
    %478 = arith.select %475, %477, %468 : vector<8x128xi1>, vector<8x128xi32>
    %479 = vector.extract_strided_slice %441 {offsets = [0, 4], sizes = [8, 1], strides = [1, 1]} : vector<8x128xf32> to vector<8x1xf32>
    %480 = vector.extract_strided_slice %0 {offsets = [4, 0], sizes = [1, 128], strides = [1, 1]} : vector<128x128xf32> to vector<1x128xf32>
    %481 = vector.broadcast %479 : vector<8x1xf32> to vector<8x128xf32>
    %482 = vector.broadcast %480 : vector<1x128xf32> to vector<8x128xf32>
    %483 = arith.addf %481, %482 : vector<8x128xf32>
    %484 = arith.addf %483, %440 : vector<8x128xf32>
    %485 = arith.cmpf ogt, %484, %476 : vector<8x128xf32>
    %486 = arith.select %485, %484, %476 : vector<8x128xi1>, vector<8x128xf32>
    %c4_i32_122 = arith.constant 4 : i32
    %487 = vector.broadcast %c4_i32_122 : i32 to vector<8x128xi32>
    %488 = arith.select %485, %487, %478 : vector<8x128xi1>, vector<8x128xi32>
    %489 = vector.extract_strided_slice %441 {offsets = [0, 5], sizes = [8, 1], strides = [1, 1]} : vector<8x128xf32> to vector<8x1xf32>
    %490 = vector.extract_strided_slice %0 {offsets = [5, 0], sizes = [1, 128], strides = [1, 1]} : vector<128x128xf32> to vector<1x128xf32>
    %491 = vector.broadcast %489 : vector<8x1xf32> to vector<8x128xf32>
    %492 = vector.broadcast %490 : vector<1x128xf32> to vector<8x128xf32>
    %493 = arith.addf %491, %492 : vector<8x128xf32>
    %494 = arith.addf %493, %440 : vector<8x128xf32>
    %495 = arith.cmpf ogt, %494, %486 : vector<8x128xf32>
    %496 = arith.select %495, %494, %486 : vector<8x128xi1>, vector<8x128xf32>
    %c5_i32_123 = arith.constant 5 : i32
    %497 = vector.broadcast %c5_i32_123 : i32 to vector<8x128xi32>
    %498 = arith.select %495, %497, %488 : vector<8x128xi1>, vector<8x128xi32>
    %c0_i32_124 = arith.constant 0 : i32
    %499 = arith.cmpi eq, %437, %c0_i32_124 : i32
    %500 = vector.broadcast %2 : vector<1x128xf32> to vector<8x128xf32>
    %501 = arith.addf %440, %500 : vector<8x128xf32>
    %502 = arith.select %499, %501, %496 : vector<8x128xf32>
    %503 = vector.broadcast %437 : i32 to vector<8x1xi32>
    %504 = arith.cmpi sgt, %1, %503 : vector<8x1xi32>
    %true_125 = arith.constant true
    %505 = arith.xori %499, %true_125 : i1
    %506 = vector.broadcast %505 : i1 to vector<8x1xi1>
    %507 = arith.andi %504, %506 : vector<8x1xi1>
    %c0_i32_126 = arith.constant 0 : i32
    %508 = vector.shape_cast %507 : vector<8x1xi1> to vector<8x1xi1>
    %509 = vector.broadcast %508 : vector<8x1xi1> to vector<8x128xi1>
    %510 = vector.broadcast %c0_i32_126 : i32 to vector<8x128xi32>
    %511 = arith.select %509, %498, %510 : vector<8x128xi1>, vector<8x128xi32>
    %c0_127 = arith.constant 0 : index
    %c0_128 = arith.constant 0 : index
    %512 = vector.load %arg7[%c0_127, %c0_128] : memref<8x128xf32, #tpu.memory_space<vmem>>, vector<8x128xf32>
    tpu.vector_store %arg7[%c0_127, %c0_128], %502 {strides = array<i32>} : memref<8x128xf32, #tpu.memory_space<vmem>>, vector<8x128xf32>,
    %c0_129 = arith.constant 0 : index
    %c0_130 = arith.constant 0 : index
    %513 = vector.load %arg6[%c0_129, %c0_130] : memref<8x128xf32, #tpu.memory_space<vmem>>, vector<8x128xf32>
    %514 = vector.shape_cast %504 : vector<8x1xi1> to vector<8x1xi1>
    %515 = vector.broadcast %514 : vector<8x1xi1> to vector<8x128xi1>
    %516 = arith.select %515, %502, %513 : vector<8x128xi1>, vector<8x128xf32>
    %c0_131 = arith.constant 0 : index
    %c0_132 = arith.constant 0 : index
    %517 = vector.load %arg6[%c0_131, %c0_132] : memref<8x128xf32, #tpu.memory_space<vmem>>, vector<8x128xf32>
    tpu.vector_store %arg6[%c0_131, %c0_132], %516 {strides = array<i32>} : memref<8x128xf32, #tpu.memory_space<vmem>>, vector<8x128xf32>,
    %518 = arith.index_cast %c5_i32_112 : i32 to index
    %c0_133 = arith.constant 0 : index
    %c0_134 = arith.constant 0 : index
    %519 = vector.load %arg5[%518, %c0_133, %c0_134] : memref<8x8x128xi32, #tpu.memory_space<vmem>>, vector<1x8x128xi32>
    %520 = vector.shape_cast %519 : vector<1x8x128xi32> to vector<8x128xi32>
    %521 = vector.shape_cast %511 : vector<8x128xi32> to vector<1x8x128xi32>
    tpu.vector_store %arg5[%518, %c0_133, %c0_134], %521 {strides = array<i32>} : memref<8x8x128xi32, #tpu.memory_space<vmem>>, vector<1x8x128xi32>,
    %c6_i32 = arith.constant 6 : i32
    %c8_i32_135 = arith.constant 8 : i32
    %522 = arith.muli %arg1, %c8_i32_135 : i32
    %523 = arith.addi %522, %c6_i32 : i32
    %524 = arith.index_cast %c6_i32 : i32 to index
    %c0_136 = arith.constant 0 : index
    %c0_137 = arith.constant 0 : index
    %525 = vector.load %arg2[%524, %c0_136, %c0_137] : memref<8x8x128xf32, #tpu.memory_space<vmem>>, vector<1x8x128xf32>
    %526 = vector.shape_cast %525 : vector<1x8x128xf32> to vector<8x128xf32>
    %c0_138 = arith.constant 0 : index
    %c0_139 = arith.constant 0 : index
    %527 = vector.load %arg7[%c0_138, %c0_139] : memref<8x128xf32, #tpu.memory_space<vmem>>, vector<8x128xf32>
    %528 = vector.extract_strided_slice %527 {offsets = [0, 0], sizes = [8, 1], strides = [1, 1]} : vector<8x128xf32> to vector<8x1xf32>
    %529 = vector.extract_strided_slice %0 {offsets = [0, 0], sizes = [1, 128], strides = [1, 1]} : vector<128x128xf32> to vector<1x128xf32>
    %530 = vector.broadcast %528 : vector<8x1xf32> to vector<8x128xf32>
    %531 = vector.broadcast %529 : vector<1x128xf32> to vector<8x128xf32>
    %532 = arith.addf %530, %531 : vector<8x128xf32>
    %533 = arith.addf %532, %526 : vector<8x128xf32>
    %c0_i32_140 = arith.constant 0 : i32
    %534 = vector.broadcast %c0_i32_140 : i32 to vector<8x128xi32>
    %535 = vector.extract_strided_slice %527 {offsets = [0, 1], sizes = [8, 1], strides = [1, 1]} : vector<8x128xf32> to vector<8x1xf32>
    %536 = vector.extract_strided_slice %0 {offsets = [1, 0], sizes = [1, 128], strides = [1, 1]} : vector<128x128xf32> to vector<1x128xf32>
    %537 = vector.broadcast %535 : vector<8x1xf32> to vector<8x128xf32>
    %538 = vector.broadcast %536 : vector<1x128xf32> to vector<8x128xf32>
    %539 = arith.addf %537, %538 : vector<8x128xf32>
    %540 = arith.addf %539, %526 : vector<8x128xf32>
    %541 = arith.cmpf ogt, %540, %533 : vector<8x128xf32>
    %542 = arith.select %541, %540, %533 : vector<8x128xi1>, vector<8x128xf32>
    %c1_i32_141 = arith.constant 1 : i32
    %543 = vector.broadcast %c1_i32_141 : i32 to vector<8x128xi32>
    %544 = arith.select %541, %543, %534 : vector<8x128xi1>, vector<8x128xi32>
    %545 = vector.extract_strided_slice %527 {offsets = [0, 2], sizes = [8, 1], strides = [1, 1]} : vector<8x128xf32> to vector<8x1xf32>
    %546 = vector.extract_strided_slice %0 {offsets = [2, 0], sizes = [1, 128], strides = [1, 1]} : vector<128x128xf32> to vector<1x128xf32>
    %547 = vector.broadcast %545 : vector<8x1xf32> to vector<8x128xf32>
    %548 = vector.broadcast %546 : vector<1x128xf32> to vector<8x128xf32>
    %549 = arith.addf %547, %548 : vector<8x128xf32>
    %550 = arith.addf %549, %526 : vector<8x128xf32>
    %551 = arith.cmpf ogt, %550, %542 : vector<8x128xf32>
    %552 = arith.select %551, %550, %542 : vector<8x128xi1>, vector<8x128xf32>
    %c2_i32_142 = arith.constant 2 : i32
    %553 = vector.broadcast %c2_i32_142 : i32 to vector<8x128xi32>
    %554 = arith.select %551, %553, %544 : vector<8x128xi1>, vector<8x128xi32>
    %555 = vector.extract_strided_slice %527 {offsets = [0, 3], sizes = [8, 1], strides = [1, 1]} : vector<8x128xf32> to vector<8x1xf32>
    %556 = vector.extract_strided_slice %0 {offsets = [3, 0], sizes = [1, 128], strides = [1, 1]} : vector<128x128xf32> to vector<1x128xf32>
    %557 = vector.broadcast %555 : vector<8x1xf32> to vector<8x128xf32>
    %558 = vector.broadcast %556 : vector<1x128xf32> to vector<8x128xf32>
    %559 = arith.addf %557, %558 : vector<8x128xf32>
    %560 = arith.addf %559, %526 : vector<8x128xf32>
    %561 = arith.cmpf ogt, %560, %552 : vector<8x128xf32>
    %562 = arith.select %561, %560, %552 : vector<8x128xi1>, vector<8x128xf32>
    %c3_i32_143 = arith.constant 3 : i32
    %563 = vector.broadcast %c3_i32_143 : i32 to vector<8x128xi32>
    %564 = arith.select %561, %563, %554 : vector<8x128xi1>, vector<8x128xi32>
    %565 = vector.extract_strided_slice %527 {offsets = [0, 4], sizes = [8, 1], strides = [1, 1]} : vector<8x128xf32> to vector<8x1xf32>
    %566 = vector.extract_strided_slice %0 {offsets = [4, 0], sizes = [1, 128], strides = [1, 1]} : vector<128x128xf32> to vector<1x128xf32>
    %567 = vector.broadcast %565 : vector<8x1xf32> to vector<8x128xf32>
    %568 = vector.broadcast %566 : vector<1x128xf32> to vector<8x128xf32>
    %569 = arith.addf %567, %568 : vector<8x128xf32>
    %570 = arith.addf %569, %526 : vector<8x128xf32>
    %571 = arith.cmpf ogt, %570, %562 : vector<8x128xf32>
    %572 = arith.select %571, %570, %562 : vector<8x128xi1>, vector<8x128xf32>
    %c4_i32_144 = arith.constant 4 : i32
    %573 = vector.broadcast %c4_i32_144 : i32 to vector<8x128xi32>
    %574 = arith.select %571, %573, %564 : vector<8x128xi1>, vector<8x128xi32>
    %575 = vector.extract_strided_slice %527 {offsets = [0, 5], sizes = [8, 1], strides = [1, 1]} : vector<8x128xf32> to vector<8x1xf32>
    %576 = vector.extract_strided_slice %0 {offsets = [5, 0], sizes = [1, 128], strides = [1, 1]} : vector<128x128xf32> to vector<1x128xf32>
    %577 = vector.broadcast %575 : vector<8x1xf32> to vector<8x128xf32>
    %578 = vector.broadcast %576 : vector<1x128xf32> to vector<8x128xf32>
    %579 = arith.addf %577, %578 : vector<8x128xf32>
    %580 = arith.addf %579, %526 : vector<8x128xf32>
    %581 = arith.cmpf ogt, %580, %572 : vector<8x128xf32>
    %582 = arith.select %581, %580, %572 : vector<8x128xi1>, vector<8x128xf32>
    %c5_i32_145 = arith.constant 5 : i32
    %583 = vector.broadcast %c5_i32_145 : i32 to vector<8x128xi32>
    %584 = arith.select %581, %583, %574 : vector<8x128xi1>, vector<8x128xi32>
    %c0_i32_146 = arith.constant 0 : i32
    %585 = arith.cmpi eq, %523, %c0_i32_146 : i32
    %586 = vector.broadcast %2 : vector<1x128xf32> to vector<8x128xf32>
    %587 = arith.addf %526, %586 : vector<8x128xf32>
    %588 = arith.select %585, %587, %582 : vector<8x128xf32>
    %589 = vector.broadcast %523 : i32 to vector<8x1xi32>
    %590 = arith.cmpi sgt, %1, %589 : vector<8x1xi32>
    %true_147 = arith.constant true
    %591 = arith.xori %585, %true_147 : i1
    %592 = vector.broadcast %591 : i1 to vector<8x1xi1>
    %593 = arith.andi %590, %592 : vector<8x1xi1>
    %c0_i32_148 = arith.constant 0 : i32
    %594 = vector.shape_cast %593 : vector<8x1xi1> to vector<8x1xi1>
    %595 = vector.broadcast %594 : vector<8x1xi1> to vector<8x128xi1>
    %596 = vector.broadcast %c0_i32_148 : i32 to vector<8x128xi32>
    %597 = arith.select %595, %584, %596 : vector<8x128xi1>, vector<8x128xi32>
    %c0_149 = arith.constant 0 : index
    %c0_150 = arith.constant 0 : index
    %598 = vector.load %arg7[%c0_149, %c0_150] : memref<8x128xf32, #tpu.memory_space<vmem>>, vector<8x128xf32>
    tpu.vector_store %arg7[%c0_149, %c0_150], %588 {strides = array<i32>} : memref<8x128xf32, #tpu.memory_space<vmem>>, vector<8x128xf32>,
    %c0_151 = arith.constant 0 : index
    %c0_152 = arith.constant 0 : index
    %599 = vector.load %arg6[%c0_151, %c0_152] : memref<8x128xf32, #tpu.memory_space<vmem>>, vector<8x128xf32>
    %600 = vector.shape_cast %590 : vector<8x1xi1> to vector<8x1xi1>
    %601 = vector.broadcast %600 : vector<8x1xi1> to vector<8x128xi1>
    %602 = arith.select %601, %588, %599 : vector<8x128xi1>, vector<8x128xf32>
    %c0_153 = arith.constant 0 : index
    %c0_154 = arith.constant 0 : index
    %603 = vector.load %arg6[%c0_153, %c0_154] : memref<8x128xf32, #tpu.memory_space<vmem>>, vector<8x128xf32>
    tpu.vector_store %arg6[%c0_153, %c0_154], %602 {strides = array<i32>} : memref<8x128xf32, #tpu.memory_space<vmem>>, vector<8x128xf32>,
    %604 = arith.index_cast %c6_i32 : i32 to index
    %c0_155 = arith.constant 0 : index
    %c0_156 = arith.constant 0 : index
    %605 = vector.load %arg5[%604, %c0_155, %c0_156] : memref<8x8x128xi32, #tpu.memory_space<vmem>>, vector<1x8x128xi32>
    %606 = vector.shape_cast %605 : vector<1x8x128xi32> to vector<8x128xi32>
    %607 = vector.shape_cast %597 : vector<8x128xi32> to vector<1x8x128xi32>
    tpu.vector_store %arg5[%604, %c0_155, %c0_156], %607 {strides = array<i32>} : memref<8x8x128xi32, #tpu.memory_space<vmem>>, vector<1x8x128xi32>,
    %c7_i32 = arith.constant 7 : i32
    %c8_i32_157 = arith.constant 8 : i32
    %608 = arith.muli %arg1, %c8_i32_157 : i32
    %609 = arith.addi %608, %c7_i32 : i32
    %610 = arith.index_cast %c7_i32 : i32 to index
    %c0_158 = arith.constant 0 : index
    %c0_159 = arith.constant 0 : index
    %611 = vector.load %arg2[%610, %c0_158, %c0_159] : memref<8x8x128xf32, #tpu.memory_space<vmem>>, vector<1x8x128xf32>
    %612 = vector.shape_cast %611 : vector<1x8x128xf32> to vector<8x128xf32>
    %c0_160 = arith.constant 0 : index
    %c0_161 = arith.constant 0 : index
    %613 = vector.load %arg7[%c0_160, %c0_161] : memref<8x128xf32, #tpu.memory_space<vmem>>, vector<8x128xf32>
    %614 = vector.extract_strided_slice %613 {offsets = [0, 0], sizes = [8, 1], strides = [1, 1]} : vector<8x128xf32> to vector<8x1xf32>
    %615 = vector.extract_strided_slice %0 {offsets = [0, 0], sizes = [1, 128], strides = [1, 1]} : vector<128x128xf32> to vector<1x128xf32>
    %616 = vector.broadcast %614 : vector<8x1xf32> to vector<8x128xf32>
    %617 = vector.broadcast %615 : vector<1x128xf32> to vector<8x128xf32>
    %618 = arith.addf %616, %617 : vector<8x128xf32>
    %619 = arith.addf %618, %612 : vector<8x128xf32>
    %c0_i32_162 = arith.constant 0 : i32
    %620 = vector.broadcast %c0_i32_162 : i32 to vector<8x128xi32>
    %621 = vector.extract_strided_slice %613 {offsets = [0, 1], sizes = [8, 1], strides = [1, 1]} : vector<8x128xf32> to vector<8x1xf32>
    %622 = vector.extract_strided_slice %0 {offsets = [1, 0], sizes = [1, 128], strides = [1, 1]} : vector<128x128xf32> to vector<1x128xf32>
    %623 = vector.broadcast %621 : vector<8x1xf32> to vector<8x128xf32>
    %624 = vector.broadcast %622 : vector<1x128xf32> to vector<8x128xf32>
    %625 = arith.addf %623, %624 : vector<8x128xf32>
    %626 = arith.addf %625, %612 : vector<8x128xf32>
    %627 = arith.cmpf ogt, %626, %619 : vector<8x128xf32>
    %628 = arith.select %627, %626, %619 : vector<8x128xi1>, vector<8x128xf32>
    %c1_i32_163 = arith.constant 1 : i32
    %629 = vector.broadcast %c1_i32_163 : i32 to vector<8x128xi32>
    %630 = arith.select %627, %629, %620 : vector<8x128xi1>, vector<8x128xi32>
    %631 = vector.extract_strided_slice %613 {offsets = [0, 2], sizes = [8, 1], strides = [1, 1]} : vector<8x128xf32> to vector<8x1xf32>
    %632 = vector.extract_strided_slice %0 {offsets = [2, 0], sizes = [1, 128], strides = [1, 1]} : vector<128x128xf32> to vector<1x128xf32>
    %633 = vector.broadcast %631 : vector<8x1xf32> to vector<8x128xf32>
    %634 = vector.broadcast %632 : vector<1x128xf32> to vector<8x128xf32>
    %635 = arith.addf %633, %634 : vector<8x128xf32>
    %636 = arith.addf %635, %612 : vector<8x128xf32>
    %637 = arith.cmpf ogt, %636, %628 : vector<8x128xf32>
    %638 = arith.select %637, %636, %628 : vector<8x128xi1>, vector<8x128xf32>
    %c2_i32_164 = arith.constant 2 : i32
    %639 = vector.broadcast %c2_i32_164 : i32 to vector<8x128xi32>
    %640 = arith.select %637, %639, %630 : vector<8x128xi1>, vector<8x128xi32>
    %641 = vector.extract_strided_slice %613 {offsets = [0, 3], sizes = [8, 1], strides = [1, 1]} : vector<8x128xf32> to vector<8x1xf32>
    %642 = vector.extract_strided_slice %0 {offsets = [3, 0], sizes = [1, 128], strides = [1, 1]} : vector<128x128xf32> to vector<1x128xf32>
    %643 = vector.broadcast %641 : vector<8x1xf32> to vector<8x128xf32>
    %644 = vector.broadcast %642 : vector<1x128xf32> to vector<8x128xf32>
    %645 = arith.addf %643, %644 : vector<8x128xf32>
    %646 = arith.addf %645, %612 : vector<8x128xf32>
    %647 = arith.cmpf ogt, %646, %638 : vector<8x128xf32>
    %648 = arith.select %647, %646, %638 : vector<8x128xi1>, vector<8x128xf32>
    %c3_i32_165 = arith.constant 3 : i32
    %649 = vector.broadcast %c3_i32_165 : i32 to vector<8x128xi32>
    %650 = arith.select %647, %649, %640 : vector<8x128xi1>, vector<8x128xi32>
    %651 = vector.extract_strided_slice %613 {offsets = [0, 4], sizes = [8, 1], strides = [1, 1]} : vector<8x128xf32> to vector<8x1xf32>
    %652 = vector.extract_strided_slice %0 {offsets = [4, 0], sizes = [1, 128], strides = [1, 1]} : vector<128x128xf32> to vector<1x128xf32>
    %653 = vector.broadcast %651 : vector<8x1xf32> to vector<8x128xf32>
    %654 = vector.broadcast %652 : vector<1x128xf32> to vector<8x128xf32>
    %655 = arith.addf %653, %654 : vector<8x128xf32>
    %656 = arith.addf %655, %612 : vector<8x128xf32>
    %657 = arith.cmpf ogt, %656, %648 : vector<8x128xf32>
    %658 = arith.select %657, %656, %648 : vector<8x128xi1>, vector<8x128xf32>
    %c4_i32_166 = arith.constant 4 : i32
    %659 = vector.broadcast %c4_i32_166 : i32 to vector<8x128xi32>
    %660 = arith.select %657, %659, %650 : vector<8x128xi1>, vector<8x128xi32>
    %661 = vector.extract_strided_slice %613 {offsets = [0, 5], sizes = [8, 1], strides = [1, 1]} : vector<8x128xf32> to vector<8x1xf32>
    %662 = vector.extract_strided_slice %0 {offsets = [5, 0], sizes = [1, 128], strides = [1, 1]} : vector<128x128xf32> to vector<1x128xf32>
    %663 = vector.broadcast %661 : vector<8x1xf32> to vector<8x128xf32>
    %664 = vector.broadcast %662 : vector<1x128xf32> to vector<8x128xf32>
    %665 = arith.addf %663, %664 : vector<8x128xf32>
    %666 = arith.addf %665, %612 : vector<8x128xf32>
    %667 = arith.cmpf ogt, %666, %658 : vector<8x128xf32>
    %668 = arith.select %667, %666, %658 : vector<8x128xi1>, vector<8x128xf32>
    %c5_i32_167 = arith.constant 5 : i32
    %669 = vector.broadcast %c5_i32_167 : i32 to vector<8x128xi32>
    %670 = arith.select %667, %669, %660 : vector<8x128xi1>, vector<8x128xi32>
    %c0_i32_168 = arith.constant 0 : i32
    %671 = arith.cmpi eq, %609, %c0_i32_168 : i32
    %672 = vector.broadcast %2 : vector<1x128xf32> to vector<8x128xf32>
    %673 = arith.addf %612, %672 : vector<8x128xf32>
    %674 = arith.select %671, %673, %668 : vector<8x128xf32>
    %675 = vector.broadcast %609 : i32 to vector<8x1xi32>
    %676 = arith.cmpi sgt, %1, %675 : vector<8x1xi32>
    %true_169 = arith.constant true
    %677 = arith.xori %671, %true_169 : i1
    %678 = vector.broadcast %677 : i1 to vector<8x1xi1>
    %679 = arith.andi %676, %678 : vector<8x1xi1>
    %c0_i32_170 = arith.constant 0 : i32
    %680 = vector.shape_cast %679 : vector<8x1xi1> to vector<8x1xi1>
    %681 = vector.broadcast %680 : vector<8x1xi1> to vector<8x128xi1>
    %682 = vector.broadcast %c0_i32_170 : i32 to vector<8x128xi32>
    %683 = arith.select %681, %670, %682 : vector<8x128xi1>, vector<8x128xi32>
    %c0_171 = arith.constant 0 : index
    %c0_172 = arith.constant 0 : index
    %684 = vector.load %arg7[%c0_171, %c0_172] : memref<8x128xf32, #tpu.memory_space<vmem>>, vector<8x128xf32>
    tpu.vector_store %arg7[%c0_171, %c0_172], %674 {strides = array<i32>} : memref<8x128xf32, #tpu.memory_space<vmem>>, vector<8x128xf32>,
    %c0_173 = arith.constant 0 : index
    %c0_174 = arith.constant 0 : index
    %685 = vector.load %arg6[%c0_173, %c0_174] : memref<8x128xf32, #tpu.memory_space<vmem>>, vector<8x128xf32>
    %686 = vector.shape_cast %676 : vector<8x1xi1> to vector<8x1xi1>
    %687 = vector.broadcast %686 : vector<8x1xi1> to vector<8x128xi1>
    %688 = arith.select %687, %674, %685 : vector<8x128xi1>, vector<8x128xf32>
    %c0_175 = arith.constant 0 : index
    %c0_176 = arith.constant 0 : index
    %689 = vector.load %arg6[%c0_175, %c0_176] : memref<8x128xf32, #tpu.memory_space<vmem>>, vector<8x128xf32>
    tpu.vector_store %arg6[%c0_175, %c0_176], %688 {strides = array<i32>} : memref<8x128xf32, #tpu.memory_space<vmem>>, vector<8x128xf32>,
    %690 = arith.index_cast %c7_i32 : i32 to index
    %c0_177 = arith.constant 0 : index
    %c0_178 = arith.constant 0 : index
    %691 = vector.load %arg5[%690, %c0_177, %c0_178] : memref<8x8x128xi32, #tpu.memory_space<vmem>>, vector<1x8x128xi32>
    %692 = vector.shape_cast %691 : vector<1x8x128xi32> to vector<8x128xi32>
    %693 = vector.shape_cast %683 : vector<8x128xi32> to vector<1x8x128xi32>
    tpu.vector_store %arg5[%690, %c0_177, %c0_178], %693 {strides = array<i32>} : memref<8x8x128xi32, #tpu.memory_space<vmem>>, vector<1x8x128xi32>,
    %c8_i32_179 = arith.constant 8 : i32
    return
  }
  func.func @transform_0(%arg0: i32, %arg1: i32) -> (i32, i32, i32) {
    %c0_i32 = arith.constant 0 : i32
    %c0_i32_0 = arith.constant 0 : i32
    return %arg1, %arg0, %c0_i32 : i32, i32, i32
  }
  func.func @transform_1(%arg0: i32, %arg1: i32) -> (i32, i32) {
    %c0_i32 = arith.constant 0 : i32
    %c0_i32_0 = arith.constant 0 : i32
    return %arg0, %c0_i32 : i32, i32
  }
  func.func @transform_2(%arg0: i32, %arg1: i32) -> (i32, i32) {
    %c0_i32 = arith.constant 0 : i32
    %c0_i32_0 = arith.constant 0 : i32
    %c0_i32_1 = arith.constant 0 : i32
    return %c0_i32, %c0_i32_0 : i32, i32
  }
  func.func @transform_3(%arg0: i32, %arg1: i32) -> (i32, i32, i32) {
    %c0_i32 = arith.constant 0 : i32
    %c0_i32_0 = arith.constant 0 : i32
    return %arg1, %arg0, %c0_i32 : i32, i32, i32
  }
  func.func @transform_4(%arg0: i32, %arg1: i32) -> (i32, i32) {
    %c0_i32 = arith.constant 0 : i32
    %c0_i32_0 = arith.constant 0 : i32
    return %arg0, %c0_i32 : i32, i32
  }
}

</mosaic_0001>

<llo_original>
// kernel: tpu_custom_call.1
$region0: #{tpu_custom_call.1}
  #allocation0 [shape = 'u32[]', space=smem, size = 0x4, offset = 0x4, fixed_abs, tag = 'smem constant byte address 0x4 - core index']
  #allocation1 [shape = 'u32[72,128]{1,0:T(1,128)}', space=vmem, size = 0x9000, scoped, tag = 'internal scratch']
  #allocation2 [shape = 'f32[8,128]{1,0:T(8,128)}', space=vmem, size = 0x1000, scoped, tag = 'scratch operand']
  %s0 = inlined_call_operand.hbm [shape: f32[8,8,128], index: 0, kind: input, shape index: {}]
  %s1 = inlined_call_operand.vmem [shape: s32[8,1], index: 1, kind: input, shape index: {}]
  %s2 = inlined_call_operand.hbm [shape: f32[128,128], index: 2, kind: input, shape index: {}]
  %s3 = inlined_call_operand.hbm [shape: s32[8,8,128], index: 3, kind: output, shape index: {0}]
  %s4 = inlined_call_operand.hbm [shape: f32[8,128], index: 4, kind: output, shape index: {1}]
  %5 = xla_tuple %s3, %s4
  %s6 = sld [smem:[#allocation0]]
  $region42: #{tpu_custom_call.1} parent=0
    _
  %s8 = ssub.s32 1, %s6
  %s9 = scalar_select 0, %s8, %s6
  $region1: #{tpu_custom_call.1} parent=0
    #allocation3 [shape = 'u8[32768]{0}', space=vmem, size = 0x8000, scoped, tag = 'input window, operand 0, single buffered']
    #allocation4 [shape = 's32[1]{0}', space=sflag, size = 0x4, scoped, tag = 'scoped memory for tpu_custom_call.1']
    #allocation5 [shape = 's32[1]{0}', space=sflag, size = 0x4, scoped, tag = 'scoped memory for tpu_custom_call.1']
    #allocation6 [shape = 'u8[65536]{0}', space=vmem, size = 0x10000, scoped, tag = 'input window, operand 2, single buffered']
    #allocation7 [shape = 's32[1]{0}', space=sflag, size = 0x4, scoped, tag = 'scoped memory for tpu_custom_call.1']
    #allocation8 [shape = 'u8[32768]{0}', space=vmem, size = 0x8000, scoped, tag = 'output window, operand 0, single buffered']
    #allocation9 [shape = 'u8[4096]{0}', space=vmem, size = 0x1000, scoped, tag = 'output window, operand 1, single buffered']
    #allocation10 [shape = 's32[1]{0}', space=sflag, size = 0x4, scoped, tag = 'scoped memory for tpu_custom_call.1']
    %10 = vsyncpa [#allocation4], 0
    %11 = vsyncpa [#allocation7], 0
    %12 = vsyncpa [#allocation5], 0
    %13 = vsyncpa [#allocation10], 0
    // Predicated region
    $region2: #{tpu_custom_call.1} parent=1 // pred_check
      _
    $region3: #{tpu_custom_call.1} parent=1 // pred_check_branch
      %15 = sbr.rel (0) target = $region5
    $region4: #{tpu_custom_call.1} parent=1 // pred_region
      %17 = vsyncadd [#allocation4], 0
      %s18 = sshll.u32 %s0, 4
      %s19 = int_to_ptr.hbm [resolvable:$true] %s18
      %s20 = sshll.u32 [#allocation3], 4
      %s21 = int_to_ptr.vmem [resolvable:$true] %s20
      %26 = dma.hbm_to_vmem [thread:$0]  %s19, 1024, %s21, [#allocation4], 128, 128, 8
    $region5: #{tpu_custom_call.1} parent=1 // pred_fallthru
      _
    // Predicated region
    $region6: #{tpu_custom_call.1} parent=1 // pred_check
      _
    $region7: #{tpu_custom_call.1} parent=1 // pred_check_branch
      %28 = sbr.rel (0) target = $region9
    $region8: #{tpu_custom_call.1} parent=1 // pred_region
      _
    $region9: #{tpu_custom_call.1} parent=1 // pred_fallthru
      _
    // Predicated region
    $region10: #{tpu_custom_call.1} parent=1 // pred_check
      _
    $region11: #{tpu_custom_call.1} parent=1 // pred_check_branch
      %30 = sbr.rel (0) target = $region13
    $region12: #{tpu_custom_call.1} parent=1 // pred_region
      %32 = vsyncadd [#allocation7], 0
      %s33 = sshll.u32 %s2, 4
      %s34 = int_to_ptr.hbm [resolvable:$true] %s33
      %s35 = sshll.u32 [#allocation6], 4
      %s36 = int_to_ptr.vmem [resolvable:$true] %s35
      %41 = dma.hbm_to_vmem [thread:$0]  %s34, 2048, %s36, [#allocation7], 128, 128, 8
    $region13: #{tpu_custom_call.1} parent=1 // pred_fallthru
      _
    // Predicated region
    $region14: #{tpu_custom_call.1} parent=1 // pred_check
      _
    $region15: #{tpu_custom_call.1} parent=1 // pred_check_branch
      %43 = sbr.rel (0) target = $region17
    $region16: #{tpu_custom_call.1} parent=1 // pred_region
      %45 = dma.done [#allocation4], 1024
    $region17: #{tpu_custom_call.1} parent=1 // pred_fallthru
      _
    // Predicated region
    $region18: #{tpu_custom_call.1} parent=1 // pred_check
      _
    $region19: #{tpu_custom_call.1} parent=1 // pred_check_branch
      %47 = sbr.rel (0) target = $region21
    $region20: #{tpu_custom_call.1} parent=1 // pred_region
      %49 = dma.done [#allocation7], 2048
    $region21: #{tpu_custom_call.1} parent=1 // pred_fallthru
      _
    %v50 = vld [vmem:[#allocation6] sm:$0xff]
    %v51 = vld [vmem:[%s1] sm:$0xff]
    %p52 = scmp.eq.s32.totalorder 0, 0
    // Predicated region
    $region22: #{tpu_custom_call.1} parent=1 // pred_check
      %p53 = pneg %p52
    $region23: #{tpu_custom_call.1} parent=1 // pred_check_branch
      %55 = sbr.rel (%p53) target = $region25
    $region24: #{tpu_custom_call.1} parent=1 // pred_region
      %56 = vst [vmem:[#allocation2] sm:$0xff] 0.0
      %57 = vst [vmem:[#allocation9] sm:$0xff] 0.0
    $region25: #{tpu_custom_call.1} parent=1 // pred_fallthru
      _
    %s58 = smul.u32 0, 8
    %v59 = vld [vmem:[#allocation3] sm:$0xff]
    %v60 = vld [vmem:[#allocation2] sm:$0xff]
    %62 = vset.pattern.permute.xlu0 0
    %63 = vperm.xlu0 %62, %v60
    %v64 = vpop.permute.xlu0 %63
    %v66 = vperm.slane %v50, 0
    %v67 = vadd.f32 %v64, %v66
    %v68 = vadd.f32 %v67, %v59
    %69 = vset.pattern.permute.xlu0 1
    %70 = vperm.xlu0 %69, %v60
    %v71 = vpop.permute.xlu0 %70
    %v73 = vperm.slane %v50, 1
    %v74 = vadd.f32 %v71, %v73
    %v75 = vadd.f32 %v74, %v59
    %vm76 = vcmp.gt.f32.partialorder %v75, %v68
    %v77 = vsel %vm76, %v75, %v68
    %v78 = vsel %vm76, 1, 0
    %79 = vset.pattern.permute.xlu0 2
    %80 = vperm.xlu0 %79, %v60
    %v81 = vpop.permute.xlu0 %80
    %v83 = vperm.slane %v50, 2
    %v84 = vadd.f32 %v81, %v83
    %v85 = vadd.f32 %v84, %v59
    %vm86 = vcmp.gt.f32.partialorder %v85, %v77
    %v87 = vsel %vm86, %v85, %v77
    %v88 = vsel %vm86, 2, %v78
    %89 = vset.pattern.permute.xlu0 3
    %90 = vperm.xlu0 %89, %v60
    %v91 = vpop.permute.xlu0 %90
    %v93 = vperm.slane %v50, 3
    %v94 = vadd.f32 %v91, %v93
    %v95 = vadd.f32 %v94, %v59
    %vm96 = vcmp.gt.f32.partialorder %v95, %v87
    %v97 = vsel %vm96, %v95, %v87
    %v98 = vsel %vm96, 3, %v88
    %99 = vset.pattern.permute.xlu0 4
    %100 = vperm.xlu0 %99, %v60
    %v101 = vpop.permute.xlu0 %100
    %v103 = vperm.slane %v50, 4
    %v104 = vadd.f32 %v101, %v103
    %v105 = vadd.f32 %v104, %v59
    %vm106 = vcmp.gt.f32.partialorder %v105, %v97
    %v107 = vsel %vm106, %v105, %v97
    %v108 = vsel %vm106, 4, %v98
    %109 = vset.pattern.permute.xlu0 5
    %110 = vperm.xlu0 %109, %v60
    %v111 = vpop.permute.xlu0 %110
    %v113 = vperm.slane %v50, 5
    %v114 = vadd.f32 %v111, %v113
    %v115 = vadd.f32 %v114, %v59
    %vm116 = vcmp.gt.f32.partialorder %v115, %v107
    %v117 = vsel %vm116, %v115, %v107
    %v118 = vsel %vm116, 5, %v108
    %p119 = scmp.eq.s32.totalorder %s58, 0
    %v120 = vadd.f32 %v59, %v103
    %s121 = scalar_select %p119, 1, 0
    %v122 = vstv %s121
    %vm123 = vcmp.eq.s32.totalorder %v122, 1
    %v124 = vsel %vm123, %v120, %v117
    %v125 = vstv %s58
    %vm126 = vcmp.gt.s32.totalorder %v51, %v125
    %p127 = scmp.ne.s32.totalorder %s58, 0
    %s128 = scalar_select %p127, 1, 0
    %v129 = vstv %s128
    %vm130 = vcmp.eq.s32.totalorder %v129, 1
    %vm131 = vmand %vm126, %vm130
    %v132 = vsel %vm131, 1, 0
    %133 = vset.pattern.permute.xlu0 0
    %134 = vperm.xlu0 %133, %v132
    %v135 = vpop.permute.xlu0 %134
    %vm136 = vcmp.eq.s32.totalorder %v135, 1
    %v137 = vsel %vm136, %v118, 0
    %138 = vst [vmem:[#allocation2] sm:$0xff] %v124
    %v139 = vld [vmem:[#allocation9] sm:$0xff]
    %v140 = vsel %vm126, 1, 0
    %141 = vset.pattern.permute.xlu0 0
    %142 = vperm.xlu0 %141, %v140
    %v143 = vpop.permute.xlu0 %142
    %vm144 = vcmp.eq.s32.totalorder %v143, 1
    %v145 = vsel %vm144, %v124, %v139
    %146 = vst [vmem:[#allocation9] sm:$0xff] %v145
    %147 = vst [vmem:[#allocation8] sm:$0xff] %v137
    %s148 = sadd.s32 %s58, 1
    %s149 = scalar_lea.vmem [#allocation3], 8
    %v150 = vld [vmem:[%s149] sm:$0xff]
    %v151 = vld [vmem:[#allocation2] sm:$0xff]
    %153 = vset.pattern.permute.xlu0 0
    %154 = vperm.xlu0 %153, %v151
    %v155 = vpop.permute.xlu0 %154
    %v157 = vadd.f32 %v155, %v66
    %v158 = vadd.f32 %v157, %v150
    %159 = vset.pattern.permute.xlu0 1
    %160 = vperm.xlu0 %159, %v151
    %v161 = vpop.permute.xlu0 %160
    %v163 = vadd.f32 %v161, %v73
    %v164 = vadd.f32 %v163, %v150
    %vm165 = vcmp.gt.f32.partialorder %v164, %v158
    %v166 = vsel %vm165, %v164, %v158
    %v167 = vsel %vm165, 1, 0
    %168 = vset.pattern.permute.xlu0 2
    %169 = vperm.xlu0 %168, %v151
    %v170 = vpop.permute.xlu0 %169
    %v172 = vadd.f32 %v170, %v83
    %v173 = vadd.f32 %v172, %v150
    %vm174 = vcmp.gt.f32.partialorder %v173, %v166
    %v175 = vsel %vm174, %v173, %v166
    %v176 = vsel %vm174, 2, %v167
    %177 = vset.pattern.permute.xlu0 3
    %178 = vperm.xlu0 %177, %v151
    %v179 = vpop.permute.xlu0 %178
    %v181 = vadd.f32 %v179, %v93
    %v182 = vadd.f32 %v181, %v150
    %vm183 = vcmp.gt.f32.partialorder %v182, %v175
    %v184 = vsel %vm183, %v182, %v175
    %v185 = vsel %vm183, 3, %v176
    %186 = vset.pattern.permute.xlu0 4
    %187 = vperm.xlu0 %186, %v151
    %v188 = vpop.permute.xlu0 %187
    %v190 = vadd.f32 %v188, %v103
    %v191 = vadd.f32 %v190, %v150
    %vm192 = vcmp.gt.f32.partialorder %v191, %v184
    %v193 = vsel %vm192, %v191, %v184
    %v194 = vsel %vm192, 4, %v185
    %195 = vset.pattern.permute.xlu0 5
    %196 = vperm.xlu0 %195, %v151
    %v197 = vpop.permute.xlu0 %196
    %v199 = vadd.f32 %v197, %v113
    %v200 = vadd.f32 %v199, %v150
    %vm201 = vcmp.gt.f32.partialorder %v200, %v193
    %v202 = vsel %vm201, %v200, %v193
    %v203 = vsel %vm201, 5, %v194
    %p204 = scmp.eq.s32.totalorder %s148, 0
    %v205 = vadd.f32 %v150, %v103
    %s206 = scalar_select %p204, 1, 0
    %v207 = vstv %s206
    %vm208 = vcmp.eq.s32.totalorder %v207, 1
    %v209 = vsel %vm208, %v205, %v202
    %v210 = vstv %s148
    %vm211 = vcmp.gt.s32.totalorder %v51, %v210
    %p212 = scmp.ne.s32.totalorder %s148, 0
    %s213 = scalar_select %p212, 1, 0
    %v214 = vstv %s213
    %vm215 = vcmp.eq.s32.totalorder %v214, 1
    %vm216 = vmand %vm211, %vm215
    %v217 = vsel %vm216, 1, 0
    %218 = vset.pattern.permute.xlu0 0
    %219 = vperm.xlu0 %218, %v217
    %v220 = vpop.permute.xlu0 %219
    %vm221 = vcmp.eq.s32.totalorder %v220, 1
    %v222 = vsel %vm221, %v203, 0
    %223 = vst [vmem:[#allocation2] sm:$0xff] %v209
    %v224 = vld [vmem:[#allocation9] sm:$0xff]
    %v225 = vsel %vm211, 1, 0
    %226 = vset.pattern.permute.xlu0 0
    %227 = vperm.xlu0 %226, %v225
    %v228 = vpop.permute.xlu0 %227
    %vm229 = vcmp.eq.s32.totalorder %v228, 1
    %v230 = vsel %vm229, %v209, %v224
    %231 = vst [vmem:[#allocation9] sm:$0xff] %v230
    %s232 = scalar_lea.vmem [#allocation8], 8
    %233 = vst [vmem:[%s232] sm:$0xff] %v222
    %s234 = sadd.s32 %s58, 2
    %s235 = scalar_lea.vmem [#allocation3], 16
    %v236 = vld [vmem:[%s235] sm:$0xff]
    %v237 = vld [vmem:[#allocation2] sm:$0xff]
    %239 = vset.pattern.permute.xlu0 0
    %240 = vperm.xlu0 %239, %v237
    %v241 = vpop.permute.xlu0 %240
    %v243 = vadd.f32 %v241, %v66
    %v244 = vadd.f32 %v243, %v236
    %245 = vset.pattern.permute.xlu0 1
    %246 = vperm.xlu0 %245, %v237
    %v247 = vpop.permute.xlu0 %246
    %v249 = vadd.f32 %v247, %v73
    %v250 = vadd.f32 %v249, %v236
    %vm251 = vcmp.gt.f32.partialorder %v250, %v244
    %v252 = vsel %vm251, %v250, %v244
    %v253 = vsel %vm251, 1, 0
    %254 = vset.pattern.permute.xlu0 2
    %255 = vperm.xlu0 %254, %v237
    %v256 = vpop.permute.xlu0 %255
    %v258 = vadd.f32 %v256, %v83
    %v259 = vadd.f32 %v258, %v236
    %vm260 = vcmp.gt.f32.partialorder %v259, %v252
    %v261 = vsel %vm260, %v259, %v252
    %v262 = vsel %vm260, 2, %v253
    %263 = vset.pattern.permute.xlu0 3
    %264 = vperm.xlu0 %263, %v237
    %v265 = vpop.permute.xlu0 %264
    %v267 = vadd.f32 %v265, %v93
    %v268 = vadd.f32 %v267, %v236
    %vm269 = vcmp.gt.f32.partialorder %v268, %v261
    %v270 = vsel %vm269, %v268, %v261
    %v271 = vsel %vm269, 3, %v262
    %272 = vset.pattern.permute.xlu0 4
    %273 = vperm.xlu0 %272, %v237
    %v274 = vpop.permute.xlu0 %273
    %v276 = vadd.f32 %v274, %v103
    %v277 = vadd.f32 %v276, %v236
    %vm278 = vcmp.gt.f32.partialorder %v277, %v270
    %v279 = vsel %vm278, %v277, %v270
    %v280 = vsel %vm278, 4, %v271
    %281 = vset.pattern.permute.xlu0 5
    %282 = vperm.xlu0 %281, %v237
    %v283 = vpop.permute.xlu0 %282
    %v285 = vadd.f32 %v283, %v113
    %v286 = vadd.f32 %v285, %v236
    %vm287 = vcmp.gt.f32.partialorder %v286, %v279
    %v288 = vsel %vm287, %v286, %v279
    %v289 = vsel %vm287, 5, %v280
    %p290 = scmp.eq.s32.totalorder %s234, 0
    %v291 = vadd.f32 %v236, %v103
    %s292 = scalar_select %p290, 1, 0
    %v293 = vstv %s292
    %vm294 = vcmp.eq.s32.totalorder %v293, 1
    %v295 = vsel %vm294, %v291, %v288
    %v296 = vstv %s234
    %vm297 = vcmp.gt.s32.totalorder %v51, %v296
    %p298 = scmp.ne.s32.totalorder %s234, 0
    %s299 = scalar_select %p298, 1, 0
    %v300 = vstv %s299
    %vm301 = vcmp.eq.s32.totalorder %v300, 1
    %vm302 = vmand %vm297, %vm301
    %v303 = vsel %vm302, 1, 0
    %304 = vset.pattern.permute.xlu0 0
    %305 = vperm.xlu0 %304, %v303
    %v306 = vpop.permute.xlu0 %305
    %vm307 = vcmp.eq.s32.totalorder %v306, 1
    %v308 = vsel %vm307, %v289, 0
    %309 = vst [vmem:[#allocation2] sm:$0xff] %v295
    %v310 = vld [vmem:[#allocation9] sm:$0xff]
    %v311 = vsel %vm297, 1, 0
    %312 = vset.pattern.permute.xlu0 0
    %313 = vperm.xlu0 %312, %v311
    %v314 = vpop.permute.xlu0 %313
    %vm315 = vcmp.eq.s32.totalorder %v314, 1
    %v316 = vsel %vm315, %v295, %v310
    %317 = vst [vmem:[#allocation9] sm:$0xff] %v316
    %s318 = scalar_lea.vmem [#allocation8], 16
    %319 = vst [vmem:[%s318] sm:$0xff] %v308
    %s320 = sadd.s32 %s58, 3
    %s321 = scalar_lea.vmem [#allocation3], 24
    %v322 = vld [vmem:[%s321] sm:$0xff]
    %v323 = vld [vmem:[#allocation2] sm:$0xff]
    %325 = vset.pattern.permute.xlu0 0
    %326 = vperm.xlu0 %325, %v323
    %v327 = vpop.permute.xlu0 %326
    %v329 = vadd.f32 %v327, %v66
    %v330 = vadd.f32 %v329, %v322
    %331 = vset.pattern.permute.xlu0 1
    %332 = vperm.xlu0 %331, %v323
    %v333 = vpop.permute.xlu0 %332
    %v335 = vadd.f32 %v333, %v73
    %v336 = vadd.f32 %v335, %v322
    %vm337 = vcmp.gt.f32.partialorder %v336, %v330
    %v338 = vsel %vm337, %v336, %v330
    %v339 = vsel %vm337, 1, 0
    %340 = vset.pattern.permute.xlu0 2
    %341 = vperm.xlu0 %340, %v323
    %v342 = vpop.permute.xlu0 %341
    %v344 = vadd.f32 %v342, %v83
    %v345 = vadd.f32 %v344, %v322
    %vm346 = vcmp.gt.f32.partialorder %v345, %v338
    %v347 = vsel %vm346, %v345, %v338
    %v348 = vsel %vm346, 2, %v339
    %349 = vset.pattern.permute.xlu0 3
    %350 = vperm.xlu0 %349, %v323
    %v351 = vpop.permute.xlu0 %350
    %v353 = vadd.f32 %v351, %v93
    %v354 = vadd.f32 %v353, %v322
    %vm355 = vcmp.gt.f32.partialorder %v354, %v347
    %v356 = vsel %vm355, %v354, %v347
    %v357 = vsel %vm355, 3, %v348
    %358 = vset.pattern.permute.xlu0 4
    %359 = vperm.xlu0 %358, %v323
    %v360 = vpop.permute.xlu0 %359
    %v362 = vadd.f32 %v360, %v103
    %v363 = vadd.f32 %v362, %v322
    %vm364 = vcmp.gt.f32.partialorder %v363, %v356
    %v365 = vsel %vm364, %v363, %v356
    %v366 = vsel %vm364, 4, %v357
    %367 = vset.pattern.permute.xlu0 5
    %368 = vperm.xlu0 %367, %v323
    %v369 = vpop.permute.xlu0 %368
    %v371 = vadd.f32 %v369, %v113
    %v372 = vadd.f32 %v371, %v322
    %vm373 = vcmp.gt.f32.partialorder %v372, %v365
    %v374 = vsel %vm373, %v372, %v365
    %v375 = vsel %vm373, 5, %v366
    %p376 = scmp.eq.s32.totalorder %s320, 0
    %v377 = vadd.f32 %v322, %v103
    %s378 = scalar_select %p376, 1, 0
    %v379 = vstv %s378
    %vm380 = vcmp.eq.s32.totalorder %v379, 1
    %v381 = vsel %vm380, %v377, %v374
    %v382 = vstv %s320
    %vm383 = vcmp.gt.s32.totalorder %v51, %v382
    %p384 = scmp.ne.s32.totalorder %s320, 0
    %s385 = scalar_select %p384, 1, 0
    %v386 = vstv %s385
    %vm387 = vcmp.eq.s32.totalorder %v386, 1
    %vm388 = vmand %vm383, %vm387
    %v389 = vsel %vm388, 1, 0
    %390 = vset.pattern.permute.xlu0 0
    %391 = vperm.xlu0 %390, %v389
    %v392 = vpop.permute.xlu0 %391
    %vm393 = vcmp.eq.s32.totalorder %v392, 1
    %v394 = vsel %vm393, %v375, 0
    %395 = vst [vmem:[#allocation2] sm:$0xff] %v381
    %v396 = vld [vmem:[#allocation9] sm:$0xff]
    %v397 = vsel %vm383, 1, 0
    %398 = vset.pattern.permute.xlu0 0
    %399 = vperm.xlu0 %398, %v397
    %v400 = vpop.permute.xlu0 %399
    %vm401 = vcmp.eq.s32.totalorder %v400, 1
    %v402 = vsel %vm401, %v381, %v396
    %403 = vst [vmem:[#allocation9] sm:$0xff] %v402
    %s404 = scalar_lea.vmem [#allocation8], 24
    %405 = vst [vmem:[%s404] sm:$0xff] %v394
    %s406 = sadd.s32 %s58, 4
    %s407 = scalar_lea.vmem [#allocation3], 32
    %v408 = vld [vmem:[%s407] sm:$0xff]
    %v409 = vld [vmem:[#allocation2] sm:$0xff]
    %411 = vset.pattern.permute.xlu0 0
    %412 = vperm.xlu0 %411, %v409
    %v413 = vpop.permute.xlu0 %412
    %v415 = vadd.f32 %v413, %v66
    %v416 = vadd.f32 %v415, %v408
    %417 = vset.pattern.permute.xlu0 1
    %418 = vperm.xlu0 %417, %v409
    %v419 = vpop.permute.xlu0 %418
    %v421 = vadd.f32 %v419, %v73
    %v422 = vadd.f32 %v421, %v408
    %vm423 = vcmp.gt.f32.partialorder %v422, %v416
    %v424 = vsel %vm423, %v422, %v416
    %v425 = vsel %vm423, 1, 0
    %426 = vset.pattern.permute.xlu0 2
    %427 = vperm.xlu0 %426, %v409
    %v428 = vpop.permute.xlu0 %427
    %v430 = vadd.f32 %v428, %v83
    %v431 = vadd.f32 %v430, %v408
    %vm432 = vcmp.gt.f32.partialorder %v431, %v424
    %v433 = vsel %vm432, %v431, %v424
    %v434 = vsel %vm432, 2, %v425
    %435 = vset.pattern.permute.xlu0 3
    %436 = vperm.xlu0 %435, %v409
    %v437 = vpop.permute.xlu0 %436
    %v439 = vadd.f32 %v437, %v93
    %v440 = vadd.f32 %v439, %v408
    %vm441 = vcmp.gt.f32.partialorder %v440, %v433
    %v442 = vsel %vm441, %v440, %v433
    %v443 = vsel %vm441, 3, %v434
    %444 = vset.pattern.permute.xlu0 4
    %445 = vperm.xlu0 %444, %v409
    %v446 = vpop.permute.xlu0 %445
    %v448 = vadd.f32 %v446, %v103
    %v449 = vadd.f32 %v448, %v408
    %vm450 = vcmp.gt.f32.partialorder %v449, %v442
    %v451 = vsel %vm450, %v449, %v442
    %v452 = vsel %vm450, 4, %v443
    %453 = vset.pattern.permute.xlu0 5
    %454 = vperm.xlu0 %453, %v409
    %v455 = vpop.permute.xlu0 %454
    %v457 = vadd.f32 %v455, %v113
    %v458 = vadd.f32 %v457, %v408
    %vm459 = vcmp.gt.f32.partialorder %v458, %v451
    %v460 = vsel %vm459, %v458, %v451
    %v461 = vsel %vm459, 5, %v452
    %p462 = scmp.eq.s32.totalorder %s406, 0
    %v463 = vadd.f32 %v408, %v103
    %s464 = scalar_select %p462, 1, 0
    %v465 = vstv %s464
    %vm466 = vcmp.eq.s32.totalorder %v465, 1
    %v467 = vsel %vm466, %v463, %v460
    %v468 = vstv %s406
    %vm469 = vcmp.gt.s32.totalorder %v51, %v468
    %p470 = scmp.ne.s32.totalorder %s406, 0
    %s471 = scalar_select %p470, 1, 0
    %v472 = vstv %s471
    %vm473 = vcmp.eq.s32.totalorder %v472, 1
    %vm474 = vmand %vm469, %vm473
    %v475 = vsel %vm474, 1, 0
    %476 = vset.pattern.permute.xlu0 0
    %477 = vperm.xlu0 %476, %v475
    %v478 = vpop.permute.xlu0 %477
    %vm479 = vcmp.eq.s32.totalorder %v478, 1
    %v480 = vsel %vm479, %v461, 0
    %481 = vst [vmem:[#allocation2] sm:$0xff] %v467
    %v482 = vld [vmem:[#allocation9] sm:$0xff]
    %v483 = vsel %vm469, 1, 0
    %484 = vset.pattern.permute.xlu0 0
    %485 = vperm.xlu0 %484, %v483
    %v486 = vpop.permute.xlu0 %485
    %vm487 = vcmp.eq.s32.totalorder %v486, 1
    %v488 = vsel %vm487, %v467, %v482
    %489 = vst [vmem:[#allocation9] sm:$0xff] %v488
    %s490 = scalar_lea.vmem [#allocation8], 32
    %491 = vst [vmem:[%s490] sm:$0xff] %v480
    %s492 = sadd.s32 %s58, 5
    %s493 = scalar_lea.vmem [#allocation3], 40
    %v494 = vld [vmem:[%s493] sm:$0xff]
    %v495 = vld [vmem:[#allocation2] sm:$0xff]
    %497 = vset.pattern.permute.xlu0 0
    %498 = vperm.xlu0 %497, %v495
    %v499 = vpop.permute.xlu0 %498
    %v501 = vadd.f32 %v499, %v66
    %v502 = vadd.f32 %v501, %v494
    %503 = vset.pattern.permute.xlu0 1
    %504 = vperm.xlu0 %503, %v495
    %v505 = vpop.permute.xlu0 %504
    %v507 = vadd.f32 %v505, %v73
    %v508 = vadd.f32 %v507, %v494
    %vm509 = vcmp.gt.f32.partialorder %v508, %v502
    %v510 = vsel %vm509, %v508, %v502
    %v511 = vsel %vm509, 1, 0
    %512 = vset.pattern.permute.xlu0 2
    %513 = vperm.xlu0 %512, %v495
    %v514 = vpop.permute.xlu0 %513
    %v516 = vadd.f32 %v514, %v83
    %v517 = vadd.f32 %v516, %v494
    %vm518 = vcmp.gt.f32.partialorder %v517, %v510
    %v519 = vsel %vm518, %v517, %v510
    %v520 = vsel %vm518, 2, %v511
    %521 = vset.pattern.permute.xlu0 3
    %522 = vperm.xlu0 %521, %v495
    %v523 = vpop.permute.xlu0 %522
    %v525 = vadd.f32 %v523, %v93
    %v526 = vadd.f32 %v525, %v494
    %vm527 = vcmp.gt.f32.partialorder %v526, %v519
    %v528 = vsel %vm527, %v526, %v519
    %v529 = vsel %vm527, 3, %v520
    %530 = vset.pattern.permute.xlu0 4
    %531 = vperm.xlu0 %530, %v495
    %v532 = vpop.permute.xlu0 %531
    %v534 = vadd.f32 %v532, %v103
    %v535 = vadd.f32 %v534, %v494
    %vm536 = vcmp.gt.f32.partialorder %v535, %v528
    %v537 = vsel %vm536, %v535, %v528
    %v538 = vsel %vm536, 4, %v529
    %539 = vset.pattern.permute.xlu0 5
    %540 = vperm.xlu0 %539, %v495
    %v541 = vpop.permute.xlu0 %540
    %v543 = vadd.f32 %v541, %v113
    %v544 = vadd.f32 %v543, %v494
    %vm545 = vcmp.gt.f32.partialorder %v544, %v537
    %v546 = vsel %vm545, %v544, %v537
    %v547 = vsel %vm545, 5, %v538
    %p548 = scmp.eq.s32.totalorder %s492, 0
    %v549 = vadd.f32 %v494, %v103
    %s550 = scalar_select %p548, 1, 0
    %v551 = vstv %s550
    %vm552 = vcmp.eq.s32.totalorder %v551, 1
    %v553 = vsel %vm552, %v549, %v546
    %v554 = vstv %s492
    %vm555 = vcmp.gt.s32.totalorder %v51, %v554
    %p556 = scmp.ne.s32.totalorder %s492, 0
    %s557 = scalar_select %p556, 1, 0
    %v558 = vstv %s557
    %vm559 = vcmp.eq.s32.totalorder %v558, 1
    %vm560 = vmand %vm555, %vm559
    %v561 = vsel %vm560, 1, 0
    %562 = vset.pattern.permute.xlu0 0
    %563 = vperm.xlu0 %562, %v561
    %v564 = vpop.permute.xlu0 %563
    %vm565 = vcmp.eq.s32.totalorder %v564, 1
    %v566 = vsel %vm565, %v547, 0
    %567 = vst [vmem:[#allocation2] sm:$0xff] %v553
    %v568 = vld [vmem:[#allocation9] sm:$0xff]
    %v569 = vsel %vm555, 1, 0
    %570 = vset.pattern.permute.xlu0 0
    %571 = vperm.xlu0 %570, %v569
    %v572 = vpop.permute.xlu0 %571
    %vm573 = vcmp.eq.s32.totalorder %v572, 1
    %v574 = vsel %vm573, %v553, %v568
    %575 = vst [vmem:[#allocation9] sm:$0xff] %v574
    %s576 = scalar_lea.vmem [#allocation8], 40
    %577 = vst [vmem:[%s576] sm:$0xff] %v566
    %s578 = sadd.s32 %s58, 6
    %s579 = scalar_lea.vmem [#allocation3], 48
    %v580 = vld [vmem:[%s579] sm:$0xff]
    %v581 = vld [vmem:[#allocation2] sm:$0xff]
    %583 = vset.pattern.permute.xlu0 0
    %584 = vperm.xlu0 %583, %v581
    %v585 = vpop.permute.xlu0 %584
    %v587 = vadd.f32 %v585, %v66
    %v588 = vadd.f32 %v587, %v580
    %589 = vset.pattern.permute.xlu0 1
    %590 = vperm.xlu0 %589, %v581
    %v591 = vpop.permute.xlu0 %590
    %v593 = vadd.f32 %v591, %v73
    %v594 = vadd.f32 %v593, %v580
    %vm595 = vcmp.gt.f32.partialorder %v594, %v588
    %v596 = vsel %vm595, %v594, %v588
    %v597 = vsel %vm595, 1, 0
    %598 = vset.pattern.permute.xlu0 2
    %599 = vperm.xlu0 %598, %v581
    %v600 = vpop.permute.xlu0 %599
    %v602 = vadd.f32 %v600, %v83
    %v603 = vadd.f32 %v602, %v580
    %vm604 = vcmp.gt.f32.partialorder %v603, %v596
    %v605 = vsel %vm604, %v603, %v596
    %v606 = vsel %vm604, 2, %v597
    %607 = vset.pattern.permute.xlu0 3
    %608 = vperm.xlu0 %607, %v581
    %v609 = vpop.permute.xlu0 %608
    %v611 = vadd.f32 %v609, %v93
    %v612 = vadd.f32 %v611, %v580
    %vm613 = vcmp.gt.f32.partialorder %v612, %v605
    %v614 = vsel %vm613, %v612, %v605
    %v615 = vsel %vm613, 3, %v606
    %616 = vset.pattern.permute.xlu0 4
    %617 = vperm.xlu0 %616, %v581
    %v618 = vpop.permute.xlu0 %617
    %v620 = vadd.f32 %v618, %v103
    %v621 = vadd.f32 %v620, %v580
    %vm622 = vcmp.gt.f32.partialorder %v621, %v614
    %v623 = vsel %vm622, %v621, %v614
    %v624 = vsel %vm622, 4, %v615
    %625 = vset.pattern.permute.xlu0 5
    %626 = vperm.xlu0 %625, %v581
    %v627 = vpop.permute.xlu0 %626
    %v629 = vadd.f32 %v627, %v113
    %v630 = vadd.f32 %v629, %v580
    %vm631 = vcmp.gt.f32.partialorder %v630, %v623
    %v632 = vsel %vm631, %v630, %v623
    %v633 = vsel %vm631, 5, %v624
    %p634 = scmp.eq.s32.totalorder %s578, 0
    %v635 = vadd.f32 %v580, %v103
    %s636 = scalar_select %p634, 1, 0
    %v637 = vstv %s636
    %vm638 = vcmp.eq.s32.totalorder %v637, 1
    %v639 = vsel %vm638, %v635, %v632
    %v640 = vstv %s578
    %vm641 = vcmp.gt.s32.totalorder %v51, %v640
    %p642 = scmp.ne.s32.totalorder %s578, 0
    %s643 = scalar_select %p642, 1, 0
    %v644 = vstv %s643
    %vm645 = vcmp.eq.s32.totalorder %v644, 1
    %vm646 = vmand %vm641, %vm645
    %v647 = vsel %vm646, 1, 0
    %648 = vset.pattern.permute.xlu0 0
    %649 = vperm.xlu0 %648, %v647
    %v650 = vpop.permute.xlu0 %649
    %vm651 = vcmp.eq.s32.totalorder %v650, 1
    %v652 = vsel %vm651, %v633, 0
    %653 = vst [vmem:[#allocation2] sm:$0xff] %v639
    %v654 = vld [vmem:[#allocation9] sm:$0xff]
    %v655 = vsel %vm641, 1, 0
    %656 = vset.pattern.permute.xlu0 0
    %657 = vperm.xlu0 %656, %v655
    %v658 = vpop.permute.xlu0 %657
    %vm659 = vcmp.eq.s32.totalorder %v658, 1
    %v660 = vsel %vm659, %v639, %v654
    %661 = vst [vmem:[#allocation9] sm:$0xff] %v660
    %s662 = scalar_lea.vmem [#allocation8], 48
    %663 = vst [vmem:[%s662] sm:$0xff] %v652
    %s664 = sadd.s32 %s58, 7
    %s665 = scalar_lea.vmem [#allocation3], 56
    %v666 = vld [vmem:[%s665] sm:$0xff]
    %v667 = vld [vmem:[#allocation2] sm:$0xff]
    %669 = vset.pattern.permute.xlu0 0
    %670 = vperm.xlu0 %669, %v667
    %v671 = vpop.permute.xlu0 %670
    %v673 = vadd.f32 %v671, %v66
    %v674 = vadd.f32 %v673, %v666
    %675 = vset.pattern.permute.xlu0 1
    %676 = vperm.xlu0 %675, %v667
    %v677 = vpop.permute.xlu0 %676
    %v679 = vadd.f32 %v677, %v73
    %v680 = vadd.f32 %v679, %v666
    %vm681 = vcmp.gt.f32.partialorder %v680, %v674
    %v682 = vsel %vm681, %v680, %v674
    %v683 = vsel %vm681, 1, 0
    %684 = vset.pattern.permute.xlu0 2
    %685 = vperm.xlu0 %684, %v667
    %v686 = vpop.permute.xlu0 %685
    %v688 = vadd.f32 %v686, %v83
    %v689 = vadd.f32 %v688, %v666
    %vm690 = vcmp.gt.f32.partialorder %v689, %v682
    %v691 = vsel %vm690, %v689, %v682
    %v692 = vsel %vm690, 2, %v683
    %693 = vset.pattern.permute.xlu0 3
    %694 = vperm.xlu0 %693, %v667
    %v695 = vpop.permute.xlu0 %694
    %v697 = vadd.f32 %v695, %v93
    %v698 = vadd.f32 %v697, %v666
    %vm699 = vcmp.gt.f32.partialorder %v698, %v691
    %v700 = vsel %vm699, %v698, %v691
    %v701 = vsel %vm699, 3, %v692
    %702 = vset.pattern.permute.xlu0 4
    %703 = vperm.xlu0 %702, %v667
    %v704 = vpop.permute.xlu0 %703
    %v706 = vadd.f32 %v704, %v103
    %v707 = vadd.f32 %v706, %v666
    %vm708 = vcmp.gt.f32.partialorder %v707, %v700
    %v709 = vsel %vm708, %v707, %v700
    %v710 = vsel %vm708, 4, %v701
    %711 = vset.pattern.permute.xlu0 5
    %712 = vperm.xlu0 %711, %v667
    %v713 = vpop.permute.xlu0 %712
    %v715 = vadd.f32 %v713, %v113
    %v716 = vadd.f32 %v715, %v666
    %vm717 = vcmp.gt.f32.partialorder %v716, %v709
    %v718 = vsel %vm717, %v716, %v709
    %v719 = vsel %vm717, 5, %v710
    %p720 = scmp.eq.s32.totalorder %s664, 0
    %v721 = vadd.f32 %v666, %v103
    %s722 = scalar_select %p720, 1, 0
    %v723 = vstv %s722
    %vm724 = vcmp.eq.s32.totalorder %v723, 1
    %v725 = vsel %vm724, %v721, %v718
    %v726 = vstv %s664
    %vm727 = vcmp.gt.s32.totalorder %v51, %v726
    %p728 = scmp.ne.s32.totalorder %s664, 0
    %s729 = scalar_select %p728, 1, 0
    %v730 = vstv %s729
    %vm731 = vcmp.eq.s32.totalorder %v730, 1
    %vm732 = vmand %vm727, %vm731
    %v733 = vsel %vm732, 1, 0
    %734 = vset.pattern.permute.xlu0 0
    %735 = vperm.xlu0 %734, %v733
    %v736 = vpop.permute.xlu0 %735
    %vm737 = vcmp.eq.s32.totalorder %v736, 1
    %v738 = vsel %vm737, %v719, 0
    %739 = vst [vmem:[#allocation2] sm:$0xff] %v725
    %v740 = vld [vmem:[#allocation9] sm:$0xff]
    %v741 = vsel %vm727, 1, 0
    %742 = vset.pattern.permute.xlu0 0
    %743 = vperm.xlu0 %742, %v741
    %v744 = vpop.permute.xlu0 %743
    %vm745 = vcmp.eq.s32.totalorder %v744, 1
    %v746 = vsel %vm745, %v725, %v740
    %747 = vst [vmem:[#allocation9] sm:$0xff] %v746
    %s748 = scalar_lea.vmem [#allocation8], 56
    %749 = vst [vmem:[%s748] sm:$0xff] %v738
    // Predicated region
    $region26: #{tpu_custom_call.1} parent=1 // pred_check
      _
    $region27: #{tpu_custom_call.1} parent=1 // pred_check_branch
      %751 = sbr.rel (0) target = $region29
    $region28: #{tpu_custom_call.1} parent=1 // pred_region
      %753 = vsyncadd [#allocation5], 0
      %s754 = sshll.u32 [#allocation8], 4
      %s755 = int_to_ptr.vmem [resolvable:$true] %s754
      %s756 = sshll.u32 %s3, 4
      %s757 = int_to_ptr.hbm [resolvable:$true] %s756
      %762 = dma.vmem_to_hbm [thread:$0]  %s755, 1024, %s757, [#allocation5], 128, 128, 8
    $region29: #{tpu_custom_call.1} parent=1 // pred_fallthru
      _
    // Predicated region
    $region30: #{tpu_custom_call.1} parent=1 // pred_check
      _
    $region31: #{tpu_custom_call.1} parent=1 // pred_check_branch
      %764 = sbr.rel (0) target = $region33
    $region32: #{tpu_custom_call.1} parent=1 // pred_region
      %766 = vsyncadd [#allocation10], 0
      %s768 = sshll.u32 [#allocation9], 4
      %s769 = int_to_ptr.vmem [resolvable:$true] %s768
      %s770 = sshll.u32 %s4, 4
      %s771 = int_to_ptr.hbm [resolvable:$true] %s770
      %773 = dma.vmem_to_hbm [thread:$0]  %s769, 128, %s771, [#allocation10]
    $region33: #{tpu_custom_call.1} parent=1 // pred_fallthru
      _
    // Predicated region
    $region34: #{tpu_custom_call.1} parent=1 // pred_check
      _
    $region35: #{tpu_custom_call.1} parent=1 // pred_check_branch
      %775 = sbr.rel (0) target = $region37
    $region36: #{tpu_custom_call.1} parent=1 // pred_region
      %777 = dma.done [#allocation5], 1024
    $region37: #{tpu_custom_call.1} parent=1 // pred_fallthru
      _
    // Predicated region
    $region38: #{tpu_custom_call.1} parent=1 // pred_check
      _
    $region39: #{tpu_custom_call.1} parent=1 // pred_check_branch
      %779 = sbr.rel (0) target = $region41
    $region40: #{tpu_custom_call.1} parent=1 // pred_region
      %781 = dma.done [#allocation10], 128
    $region41: #{tpu_custom_call.1} parent=1 // pred_fallthru
      _
    %782 = vsyncpa [#allocation4], 1
    %783 = vsyncpa [#allocation7], 1
    %784 = vsyncpa [#allocation5], 1
    %785 = vsyncpa [#allocation10], 1

</llo_original>
